<compile_context>
chip_gen: v6e
topology: v6e:2x2x1
jax: 0.10.0
libtpu: 0.0.40
codegen_flags: <defaults>
</compile_context>

<pallas_src>
import functools
import math

import jax
import jax.numpy as jnp
from jax.experimental import pallas as pl
from jax.experimental.pallas import tpu as pltpu


# ------------------------------ fused kernel --------------------------------
def _encoder_stack_kernel(x_ref, wqkv_ref, bqkv_ref, wo_ref, bo_ref,
                          ln1g_ref, ln1b_ref, w1_ref, b1_ref,
                          w2_ref, b2_ref, ln2g_ref, ln2b_ref,
                          out_ref, act_scr, ctx_scr,
                          *, num_heads, frames, eps):
    layer = pl.program_id(1)
    M, D = act_scr.shape                     # M = NB * frames
    dh = D // num_heads
    nb = M // frames

    # Load the batch block into the f32 layer-carry scratch on the first layer.
    @pl.when(layer == 0)
    def _():
        act_scr[...] = x_ref[...].reshape(M, D).astype(jnp.float32)

    x = act_scr[...]                                          # (M, D) f32

    # ---------------- QKV projection (bf16 MXU, f32 accumulate) -------------
    qkv = jnp.dot(x.astype(jnp.bfloat16), wqkv_ref[...],
                  preferred_element_type=jnp.float32) + bqkv_ref[...]
    qkv_b = qkv.astype(jnp.bfloat16)          # Q columns carry the 1/sqrt(dh)

    # ---------------- attention: per batch element, head pairs --------------
    group = 2 if num_heads % 2 == 0 else 1    # 128-lane slabs at hubert dh=64
    gw = group * dh
    for b in range(nb):
        r0 = b * frames
        for g in range(num_heads // group):
            c0 = g * gw
            qg = qkv_b[r0:r0 + frames, c0:c0 + gw]
            kg = qkv_b[r0:r0 + frames, D + c0:D + c0 + gw]
            vg = qkv_b[r0:r0 + frames, 2 * D + c0:2 * D + c0 + gw]
            ctxs = []
            for h in range(group):
                qh = qg[:, h * dh:(h + 1) * dh]
                kh = kg[:, h * dh:(h + 1) * dh]
                vh = vg[:, h * dh:(h + 1) * dh]
                # q @ k^T without materializing a K transpose (no vxpose).
                s = jax.lax.dot_general(qh, kh, (((1,), (1,)), ((), ())),
                                        preferred_element_type=jnp.float32)
                s = s - jnp.max(s, axis=-1, keepdims=True)
                p = jnp.exp(s)                                     # f32
                inv = 1.0 / jnp.sum(p, axis=-1, keepdims=True)     # exact (F,1)
                ctx = jnp.dot(p.astype(jnp.bfloat16), vh,
                              preferred_element_type=jnp.float32) * inv
                ctxs.append(ctx.astype(jnp.bfloat16))
            ctx_scr[r0:r0 + frames, c0:c0 + gw] = (
                ctxs[0] if group == 1 else jnp.concatenate(ctxs, axis=-1))

    attn = jnp.dot(ctx_scr[...], wo_ref[...],
                   preferred_element_type=jnp.float32) + bo_ref[...]

    # ---------------- residual + LayerNorm1 (post-norm, f32) ----------------
    y = x + attn
    mu = jnp.mean(y, axis=-1, keepdims=True)
    var = jnp.mean((y - mu) ** 2, axis=-1, keepdims=True)
    y = (y - mu) * jax.lax.rsqrt(var + eps) * ln1g_ref[...] + ln1b_ref[...]

    # ---------------- FFN: linear1 -> gelu(tanh) -> linear2 -----------------
    hdn = jnp.dot(y.astype(jnp.bfloat16), w1_ref[...],
                  preferred_element_type=jnp.float32) + b1_ref[...]
    hdn = jax.nn.gelu(hdn, approximate=True)          # tanh approx, EUP slot
    ff = jnp.dot(hdn.astype(jnp.bfloat16), w2_ref[...],
                 preferred_element_type=jnp.float32) + b2_ref[...]

    # ---------------- residual + LayerNorm2 ---------------------------------
    z = y + ff
    mu2 = jnp.mean(z, axis=-1, keepdims=True)
    var2 = jnp.mean((z - mu2) ** 2, axis=-1, keepdims=True)
    z = (z - mu2) * jax.lax.rsqrt(var2 + eps) * ln2g_ref[...] + ln2b_ref[...]

    act_scr[...] = z                          # carry to the next layer step
    out_ref[...] = z.reshape(out_ref.shape).astype(out_ref.dtype)


# ------------------------------ wrapper --------------------------------------
def _choose_batch_block(batch, max_nb=4):
    """Largest NB dividing B that still leaves >=2 parallel grid steps."""
    divisors = [nb for nb in range(1, min(max_nb, batch) + 1) if batch % nb == 0]
    multi_step = [nb for nb in divisors if batch // nb >= 2]
    return max(multi_step) if multi_step else max(divisors)


def _vmem_limit_bytes():
    cap = None
    try:
        cap = getattr(pltpu.get_tpu_info(), "vmem_capacity_bytes", None)
    except Exception:  # pragma: no cover - conservative fallback
        cap = None
    if cap is None:
        cap = 128 * 1024 * 1024
    # 64 MiB parts (v7x): leave headroom; 128 MiB parts (v5e/v6e): generous.
    return (48 if cap <= 64 * 1024 * 1024 else 64) * 1024 * 1024


def transformer_encoder_forward(src, stacked_params, *, num_heads,
                                output_layer=None, eps=1e-5):
    """TransformerEncoder.forward (batch_first, eval mode, mask=None)."""
    params = {k: v[:output_layer] for k, v in stacked_params.items()}
    num_layers = int(params["wqkv"].shape[0])
    if num_layers == 0:
        return src

    B, F_, D = src.shape
    assert D % num_heads == 0
    nb = _choose_batch_block(B)

    names = ["wqkv", "bqkv", "wo", "bo", "ln1_g", "ln1_b",
             "w1", "b1", "w2", "b2", "ln2_g", "ln2_b"]
    weights = [params[n] for n in names]

    act_spec = pl.BlockSpec((nb, F_, D), lambda b, l: (b, 0, 0))
    # Weights vary along the (inner, "arbitrary") layer axis => the pipeline
    # double-buffers them and prefetches layer l+1 while layer l computes.
    w_specs = [pl.BlockSpec((pl.Squeezed(),) + w.shape[1:],
                            lambda b, l: (l, 0, 0))
               for w in weights]

    kernel = functools.partial(_encoder_stack_kernel, num_heads=num_heads,
                               frames=F_, eps=eps)
    return pl.pallas_call(
        kernel,
        out_shape=jax.ShapeDtypeStruct((B, F_, D), src.dtype),
        grid=(B // nb, num_layers),
        in_specs=[act_spec] + w_specs,
        out_specs=pl.BlockSpec((nb, F_, D), lambda b, l: (b, 0, 0)),
        scratch_shapes=[pltpu.VMEM((nb * F_, D), jnp.float32),    # layer carry
                        pltpu.VMEM((nb * F_, D), jnp.bfloat16)],  # ctx slab
        compiler_params=pltpu.CompilerParams(
            dimension_semantics=("parallel", "arbitrary"),
            vmem_limit_bytes=_vmem_limit_bytes()),
    )(src, *weights)


# --------------------------- parameter packing ------------------------------
def pack_layer_params(p, num_heads):
    """Offline transform of PyTorch-style f32 params into kernel form: fold
    1/sqrt(dh) into the Q columns, bf16 weight matrices, f32 biases/LN."""
    D = p["wo"].shape[0]
    dh = D // num_heads
    scale = 1.0 / math.sqrt(dh)
    wqkv = p["wqkv"].at[:, :D].multiply(scale)
    bqkv = p["bqkv"].at[:, :D].multiply(scale)
    return {
        "wqkv": wqkv.astype(jnp.bfloat16),
        "bqkv": bqkv.astype(jnp.float32),
        "wo": p["wo"].astype(jnp.bfloat16),
        "bo": p["bo"].astype(jnp.float32),
        "ln1_g": p["ln1_g"].astype(jnp.float32),
        "ln1_b": p["ln1_b"].astype(jnp.float32),
        "w1": p["w1"].astype(jnp.bfloat16),
        "b1": p["b1"].astype(jnp.float32),
        "w2": p["w2"].astype(jnp.bfloat16),
        "b2": p["b2"].astype(jnp.float32),
        "ln2_g": p["ln2_g"].astype(jnp.float32),
        "ln2_b": p["ln2_b"].astype(jnp.float32),
    }


def pack_stacked_params(layer_params, num_heads):
    """Stack all layers' packed params along a leading L axis."""
    packed = [pack_layer_params(p, num_heads) for p in layer_params]
    return {k: jnp.stack([p[k] for p in packed], axis=0) for k in packed[0]}


# --------------------------- deterministic params ---------------------------
def init_layer_params(key, d_model, dim_ff):
    ks = jax.random.split(key, 4)
    s = 0.02
    return {
        "wqkv": jax.random.normal(ks[0], (d_model, 3 * d_model), jnp.float32) * s,
        "bqkv": jnp.zeros((1, 3 * d_model), jnp.float32),
        "wo": jax.random.normal(ks[1], (d_model, d_model), jnp.float32) * s,
        "bo": jnp.zeros((1, d_model), jnp.float32),
        "ln1_g": jnp.ones((1, d_model), jnp.float32),
        "ln1_b": jnp.zeros((1, d_model), jnp.float32),
        "w1": jax.random.normal(ks[2], (d_model, dim_ff), jnp.float32) * s,
        "b1": jnp.zeros((1, dim_ff), jnp.float32),
        "w2": jax.random.normal(ks[3], (dim_ff, d_model), jnp.float32) * s,
        "b2": jnp.zeros((1, d_model), jnp.float32),
        "ln2_g": jnp.ones((1, d_model), jnp.float32),
        "ln2_b": jnp.zeros((1, d_model), jnp.float32),
    }


# --------------------------- pure-JAX reference ------------------------------
def _layer_ref(x, p, num_heads, eps=1e-5):
    B, F_, D = x.shape
    dh = D // num_heads
    qkv = x @ p["wqkv"] + p["bqkv"][0]
    q, k, v = qkv[..., :D], qkv[..., D:2 * D], qkv[..., 2 * D:]
    q = q.reshape(B, F_, num_heads, dh).transpose(0, 2, 1, 3) / math.sqrt(dh)
    k = k.reshape(B, F_, num_heads, dh).transpose(0, 2, 1, 3)
    v = v.reshape(B, F_, num_heads, dh).transpose(0, 2, 1, 3)
    s = jnp.einsum("bhqd,bhkd->bhqk", q, k)
    a = jax.nn.softmax(s, axis=-1)
    ctx = jnp.einsum("bhqk,bhkd->bhqd", a, v).transpose(0, 2, 1, 3).reshape(B, F_, D)
    attn = ctx @ p["wo"] + p["bo"][0]

    def ln(t, g, b):
        mu = jnp.mean(t, -1, keepdims=True)
        var = jnp.mean((t - mu) ** 2, -1, keepdims=True)
        return (t - mu) * jax.lax.rsqrt(var + eps) * g[0] + b[0]

    y = ln(x + attn, p["ln1_g"], p["ln1_b"])
    ff = jax.nn.gelu(y @ p["w1"] + p["b1"][0], approximate=False) @ p["w2"] + p["b2"][0]
    return ln(y + ff, p["ln2_g"], p["ln2_b"])


if __name__ == "__main__":
    # Small shapes consistent with the module ([B, F, D]); hubert uses D=768,
    # nhead=12, ff=3072, 12 layers -- scaled down here.
    B, F_, D = 2, 8, 32
    NUM_HEADS, DIM_FF, NUM_LAYERS = 4, 64, 2

    key = jax.random.PRNGKey(0)
    k_src, *k_layers = jax.random.split(key, NUM_LAYERS + 1)
    src = jax.random.normal(k_src, (B, F_, D), jnp.float32)
    layer_params = [init_layer_params(k, D, DIM_FF) for k in k_layers]
    stacked = pack_stacked_params(layer_params, NUM_HEADS)

    out = transformer_encoder_forward(src, stacked, num_heads=NUM_HEADS,
                                      output_layer=None)
    out = jax.block_until_ready(out)

    # correctness check against a pure-JAX f32 reference (kernel uses bf16 MXU
    # operands + tanh gelu, hence the relaxed tolerance)
    ref = src
    for p in layer_params:
        ref = _layer_ref(ref, p, NUM_HEADS)
    assert out.shape == (B, F_, D)
    assert jnp.allclose(out, ref, atol=5e-2, rtol=5e-2), "mismatch vs reference"

    print("KERNEL_OK")
</pallas_src>

<mosaic_0001>
module attributes {stable_mosaic.version = 11 : i64} {
  func.func @_encoder_stack_kernel(%arg0: i32, %arg1: i32, %arg2: memref<1x8x32xf32, #tpu.memory_space<vmem>>, %arg3: memref<1x32x96xbf16, #tpu.memory_space<vmem>>, %arg4: memref<1x1x96xf32, #tpu.memory_space<vmem>>, %arg5: memref<1x32x32xbf16, #tpu.memory_space<vmem>>, %arg6: memref<1x1x32xf32, #tpu.memory_space<vmem>>, %arg7: memref<1x1x32xf32, #tpu.memory_space<vmem>>, %arg8: memref<1x1x32xf32, #tpu.memory_space<vmem>>, %arg9: memref<1x32x64xbf16, #tpu.memory_space<vmem>>, %arg10: memref<1x1x64xf32, #tpu.memory_space<vmem>>, %arg11: memref<1x64x32xbf16, #tpu.memory_space<vmem>>, %arg12: memref<1x1x32xf32, #tpu.memory_space<vmem>>, %arg13: memref<1x1x32xf32, #tpu.memory_space<vmem>>, %arg14: memref<1x1x32xf32, #tpu.memory_space<vmem>>, %arg15: memref<1x8x32xf32, #tpu.memory_space<vmem>>, %arg16: memref<8x32xf32, #tpu.memory_space<vmem>>, %arg17: memref<8x32xbf16, #tpu.memory_space<vmem>>) attributes {dimension_semantics = [#tpu.dimension_semantics<parallel>, #tpu.dimension_semantics<arbitrary>], iteration_bounds = array<i64: 2, 2>, scalar_prefetch = 0 : i64, scratch_operands = 2 : i64, tpu.core_type = #tpu.core_type<tc>, window_params = [{transform_indices = @transform_0, window_bounds = array<i64: 1, 8, 32>}, {transform_indices = @transform_1, window_bounds = array<i64: 1, 32, 96>}, {transform_indices = @transform_2, window_bounds = array<i64: 1, 1, 96>}, {transform_indices = @transform_3, window_bounds = array<i64: 1, 32, 32>}, {transform_indices = @transform_4, window_bounds = array<i64: 1, 1, 32>}, {transform_indices = @transform_5, window_bounds = array<i64: 1, 1, 32>}, {transform_indices = @transform_6, window_bounds = array<i64: 1, 1, 32>}, {transform_indices = @transform_7, window_bounds = array<i64: 1, 32, 64>}, {transform_indices = @transform_8, window_bounds = array<i64: 1, 1, 64>}, {transform_indices = @transform_9, window_bounds = array<i64: 1, 64, 32>}, {transform_indices = @transform_10, window_bounds = array<i64: 1, 1, 32>}, {transform_indices = @transform_11, window_bounds = array<i64: 1, 1, 32>}, {transform_indices = @transform_12, window_bounds = array<i64: 1, 1, 32>}, {transform_indices = @transform_13, window_bounds = array<i64: 1, 8, 32>}]} {
    %c0_i32 = arith.constant 0 : i32
    %0 = arith.cmpi eq, %arg1, %c0_i32 : i32
    %1 = arith.extui %0 : i1 to i32
    %c0_i32_0 = arith.constant 0 : i32
    %2 = arith.cmpi ne, %1, %c0_i32_0 : i32
    scf.if %2 {
      %c0_85 = arith.constant 0 : index
      %c0_86 = arith.constant 0 : index
      %c0_87 = arith.constant 0 : index
      %189 = vector.load %arg2[%c0_85, %c0_86, %c0_87] : memref<1x8x32xf32, #tpu.memory_space<vmem>>, vector<1x8x32xf32>
      %190 = vector.shape_cast %189 : vector<1x8x32xf32> to vector<8x32xf32>
      %c0_88 = arith.constant 0 : index
      %c0_89 = arith.constant 0 : index
      %191 = vector.load %arg16[%c0_88, %c0_89] : memref<8x32xf32, #tpu.memory_space<vmem>>, vector<8x32xf32>
      tpu.vector_store %arg16[%c0_88, %c0_89], %190 {strides = array<i32>} : memref<8x32xf32, #tpu.memory_space<vmem>>, vector<8x32xf32>,
    } else {
    }
    %c0 = arith.constant 0 : index
    %c0_1 = arith.constant 0 : index
    %3 = vector.load %arg16[%c0, %c0_1] : memref<8x32xf32, #tpu.memory_space<vmem>>, vector<8x32xf32>
    %4 = arith.truncf %3 : vector<8x32xf32> to vector<8x32xbf16>
    %c0_2 = arith.constant 0 : index
    %c0_3 = arith.constant 0 : index
    %c0_4 = arith.constant 0 : index
    %5 = vector.load %arg3[%c0_2, %c0_3, %c0_4] : memref<1x32x96xbf16, #tpu.memory_space<vmem>>, vector<1x32x96xbf16>
    %6 = vector.shape_cast %5 : vector<1x32x96xbf16> to vector<32x96xbf16>
    %cst = arith.constant dense<0.000000e+00> : vector<8x96xf32>
    %7 = tpu.matmul %4, %6, %cst {dimension_numbers = #tpu.dot_dimension_numbers<[1], [0], [0], [1], [0, 0, 1, 1], [], []>} : vector<8x32xbf16>, vector<32x96xbf16>, vector<8x96xf32> -> vector<8x96xf32>
    %c0_5 = arith.constant 0 : index
    %c0_6 = arith.constant 0 : index
    %c0_7 = arith.constant 0 : index
    %8 = vector.load %arg4[%c0_5, %c0_6, %c0_7] : memref<1x1x96xf32, #tpu.memory_space<vmem>>, vector<1x1x96xf32>
    %9 = vector.shape_cast %8 : vector<1x1x96xf32> to vector<1x96xf32>
    %10 = vector.broadcast %9 : vector<1x96xf32> to vector<8x96xf32>
    %11 = arith.addf %7, %10 : vector<8x96xf32>
    %12 = arith.truncf %11 : vector<8x96xf32> to vector<8x96xbf16>
    %13 = vector.extract_strided_slice %12 {offsets = [0, 0], sizes = [8, 16], strides = [1, 1]} : vector<8x96xbf16> to vector<8x16xbf16>
    %14 = vector.extract_strided_slice %12 {offsets = [0, 32], sizes = [8, 16], strides = [1, 1]} : vector<8x96xbf16> to vector<8x16xbf16>
    %15 = vector.extract_strided_slice %12 {offsets = [0, 64], sizes = [8, 16], strides = [1, 1]} : vector<8x96xbf16> to vector<8x16xbf16>
    %16 = vector.extract_strided_slice %13 {offsets = [0, 0], sizes = [8, 8], strides = [1, 1]} : vector<8x16xbf16> to vector<8x8xbf16>
    %17 = vector.extract_strided_slice %14 {offsets = [0, 0], sizes = [8, 8], strides = [1, 1]} : vector<8x16xbf16> to vector<8x8xbf16>
    %18 = vector.extract_strided_slice %15 {offsets = [0, 0], sizes = [8, 8], strides = [1, 1]} : vector<8x16xbf16> to vector<8x8xbf16>
    %cst_8 = arith.constant dense<0.000000e+00> : vector<8x8xf32>
    %19 = tpu.matmul %16, %17, %cst_8 {dimension_numbers = #tpu.dot_dimension_numbers<[1], [1], [0], [0], [0, 0, 1, 0], [], []>} : vector<8x8xbf16>, vector<8x8xbf16>, vector<8x8xf32> -> vector<8x8xf32>
    %cst_9 = arith.constant dense<0xFF800000> : vector<8xf32>
    %20 = vector.multi_reduction <maximumf>, %19, %cst_9 [1] : vector<8x8xf32> to vector<8xf32>
    %21 = vector.shape_cast %20 : vector<8xf32> to vector<8x1xf32>
    %22 = vector.broadcast %21 : vector<8x1xf32> to vector<8x8xf32>
    %23 = arith.subf %19, %22 : vector<8x8xf32>
    %24 = math.exp %23 : vector<8x8xf32>
    %cst_10 = arith.constant dense<0.000000e+00> : vector<8xf32>
    %25 = vector.multi_reduction <add>, %24, %cst_10 [1] : vector<8x8xf32> to vector<8xf32>
    %26 = vector.shape_cast %25 : vector<8xf32> to vector<8x1xf32>
    %cst_11 = arith.constant 1.000000e+00 : f32
    %27 = vector.broadcast %cst_11 : f32 to vector<8x1xf32>
    %28 = arith.divf %27, %26 : vector<8x1xf32>
    %29 = arith.truncf %24 : vector<8x8xf32> to vector<8x8xbf16>
    %cst_12 = arith.constant dense<0.000000e+00> : vector<8x8xf32>
    %30 = tpu.matmul %29, %18, %cst_12 {dimension_numbers = #tpu.dot_dimension_numbers<[1], [0], [0], [1], [0, 0, 1, 1], [], []>} : vector<8x8xbf16>, vector<8x8xbf16>, vector<8x8xf32> -> vector<8x8xf32>
    %31 = vector.broadcast %28 : vector<8x1xf32> to vector<8x8xf32>
    %32 = arith.mulf %30, %31 : vector<8x8xf32>
    %33 = arith.truncf %32 : vector<8x8xf32> to vector<8x8xbf16>
    %34 = vector.extract_strided_slice %13 {offsets = [0, 8], sizes = [8, 8], strides = [1, 1]} : vector<8x16xbf16> to vector<8x8xbf16>
    %35 = vector.extract_strided_slice %14 {offsets = [0, 8], sizes = [8, 8], strides = [1, 1]} : vector<8x16xbf16> to vector<8x8xbf16>
    %36 = vector.extract_strided_slice %15 {offsets = [0, 8], sizes = [8, 8], strides = [1, 1]} : vector<8x16xbf16> to vector<8x8xbf16>
    %cst_13 = arith.constant dense<0.000000e+00> : vector<8x8xf32>
    %37 = tpu.matmul %34, %35, %cst_13 {dimension_numbers = #tpu.dot_dimension_numbers<[1], [1], [0], [0], [0, 0, 1, 0], [], []>} : vector<8x8xbf16>, vector<8x8xbf16>, vector<8x8xf32> -> vector<8x8xf32>
    %cst_14 = arith.constant dense<0xFF800000> : vector<8xf32>
    %38 = vector.multi_reduction <maximumf>, %37, %cst_14 [1] : vector<8x8xf32> to vector<8xf32>
    %39 = vector.shape_cast %38 : vector<8xf32> to vector<8x1xf32>
    %40 = vector.broadcast %39 : vector<8x1xf32> to vector<8x8xf32>
    %41 = arith.subf %37, %40 : vector<8x8xf32>
    %42 = math.exp %41 : vector<8x8xf32>
    %cst_15 = arith.constant dense<0.000000e+00> : vector<8xf32>
    %43 = vector.multi_reduction <add>, %42, %cst_15 [1] : vector<8x8xf32> to vector<8xf32>
    %44 = vector.shape_cast %43 : vector<8xf32> to vector<8x1xf32>
    %cst_16 = arith.constant 1.000000e+00 : f32
    %45 = vector.broadcast %cst_16 : f32 to vector<8x1xf32>
    %46 = arith.divf %45, %44 : vector<8x1xf32>
    %47 = arith.truncf %42 : vector<8x8xf32> to vector<8x8xbf16>
    %cst_17 = arith.constant dense<0.000000e+00> : vector<8x8xf32>
    %48 = tpu.matmul %47, %36, %cst_17 {dimension_numbers = #tpu.dot_dimension_numbers<[1], [0], [0], [1], [0, 0, 1, 1], [], []>} : vector<8x8xbf16>, vector<8x8xbf16>, vector<8x8xf32> -> vector<8x8xf32>
    %49 = vector.broadcast %46 : vector<8x1xf32> to vector<8x8xf32>
    %50 = arith.mulf %48, %49 : vector<8x8xf32>
    %51 = arith.truncf %50 : vector<8x8xf32> to vector<8x8xbf16>
    %52 = tpu.concatenate %33, %51 in 1 : vector<8x8xbf16>, vector<8x8xbf16> -> vector<8x16xbf16>
    %c0_18 = arith.constant 0 : index
    %c0_19 = arith.constant 0 : index
    %53 = vector.load %arg17[%c0_18, %c0_19] : memref<8x32xbf16, #tpu.memory_space<vmem>>, vector<8x16xbf16>
    tpu.vector_store %arg17[%c0_18, %c0_19], %52 {strides = array<i32>} : memref<8x32xbf16, #tpu.memory_space<vmem>>, vector<8x16xbf16>,
    %54 = vector.extract_strided_slice %12 {offsets = [0, 16], sizes = [8, 16], strides = [1, 1]} : vector<8x96xbf16> to vector<8x16xbf16>
    %55 = vector.extract_strided_slice %12 {offsets = [0, 48], sizes = [8, 16], strides = [1, 1]} : vector<8x96xbf16> to vector<8x16xbf16>
    %56 = vector.extract_strided_slice %12 {offsets = [0, 80], sizes = [8, 16], strides = [1, 1]} : vector<8x96xbf16> to vector<8x16xbf16>
    %57 = vector.extract_strided_slice %54 {offsets = [0, 0], sizes = [8, 8], strides = [1, 1]} : vector<8x16xbf16> to vector<8x8xbf16>
    %58 = vector.extract_strided_slice %55 {offsets = [0, 0], sizes = [8, 8], strides = [1, 1]} : vector<8x16xbf16> to vector<8x8xbf16>
    %59 = vector.extract_strided_slice %56 {offsets = [0, 0], sizes = [8, 8], strides = [1, 1]} : vector<8x16xbf16> to vector<8x8xbf16>
    %cst_20 = arith.constant dense<0.000000e+00> : vector<8x8xf32>
    %60 = tpu.matmul %57, %58, %cst_20 {dimension_numbers = #tpu.dot_dimension_numbers<[1], [1], [0], [0], [0, 0, 1, 0], [], []>} : vector<8x8xbf16>, vector<8x8xbf16>, vector<8x8xf32> -> vector<8x8xf32>
    %cst_21 = arith.constant dense<0xFF800000> : vector<8xf32>
    %61 = vector.multi_reduction <maximumf>, %60, %cst_21 [1] : vector<8x8xf32> to vector<8xf32>
    %62 = vector.shape_cast %61 : vector<8xf32> to vector<8x1xf32>
    %63 = vector.broadcast %62 : vector<8x1xf32> to vector<8x8xf32>
    %64 = arith.subf %60, %63 : vector<8x8xf32>
    %65 = math.exp %64 : vector<8x8xf32>
    %cst_22 = arith.constant dense<0.000000e+00> : vector<8xf32>
    %66 = vector.multi_reduction <add>, %65, %cst_22 [1] : vector<8x8xf32> to vector<8xf32>
    %67 = vector.shape_cast %66 : vector<8xf32> to vector<8x1xf32>
    %cst_23 = arith.constant 1.000000e+00 : f32
    %68 = vector.broadcast %cst_23 : f32 to vector<8x1xf32>
    %69 = arith.divf %68, %67 : vector<8x1xf32>
    %70 = arith.truncf %65 : vector<8x8xf32> to vector<8x8xbf16>
    %cst_24 = arith.constant dense<0.000000e+00> : vector<8x8xf32>
    %71 = tpu.matmul %70, %59, %cst_24 {dimension_numbers = #tpu.dot_dimension_numbers<[1], [0], [0], [1], [0, 0, 1, 1], [], []>} : vector<8x8xbf16>, vector<8x8xbf16>, vector<8x8xf32> -> vector<8x8xf32>
    %72 = vector.broadcast %69 : vector<8x1xf32> to vector<8x8xf32>
    %73 = arith.mulf %71, %72 : vector<8x8xf32>
    %74 = arith.truncf %73 : vector<8x8xf32> to vector<8x8xbf16>
    %75 = vector.extract_strided_slice %54 {offsets = [0, 8], sizes = [8, 8], strides = [1, 1]} : vector<8x16xbf16> to vector<8x8xbf16>
    %76 = vector.extract_strided_slice %55 {offsets = [0, 8], sizes = [8, 8], strides = [1, 1]} : vector<8x16xbf16> to vector<8x8xbf16>
    %77 = vector.extract_strided_slice %56 {offsets = [0, 8], sizes = [8, 8], strides = [1, 1]} : vector<8x16xbf16> to vector<8x8xbf16>
    %cst_25 = arith.constant dense<0.000000e+00> : vector<8x8xf32>
    %78 = tpu.matmul %75, %76, %cst_25 {dimension_numbers = #tpu.dot_dimension_numbers<[1], [1], [0], [0], [0, 0, 1, 0], [], []>} : vector<8x8xbf16>, vector<8x8xbf16>, vector<8x8xf32> -> vector<8x8xf32>
    %cst_26 = arith.constant dense<0xFF800000> : vector<8xf32>
    %79 = vector.multi_reduction <maximumf>, %78, %cst_26 [1] : vector<8x8xf32> to vector<8xf32>
    %80 = vector.shape_cast %79 : vector<8xf32> to vector<8x1xf32>
    %81 = vector.broadcast %80 : vector<8x1xf32> to vector<8x8xf32>
    %82 = arith.subf %78, %81 : vector<8x8xf32>
    %83 = math.exp %82 : vector<8x8xf32>
    %cst_27 = arith.constant dense<0.000000e+00> : vector<8xf32>
    %84 = vector.multi_reduction <add>, %83, %cst_27 [1] : vector<8x8xf32> to vector<8xf32>
    %85 = vector.shape_cast %84 : vector<8xf32> to vector<8x1xf32>
    %cst_28 = arith.constant 1.000000e+00 : f32
    %86 = vector.broadcast %cst_28 : f32 to vector<8x1xf32>
    %87 = arith.divf %86, %85 : vector<8x1xf32>
    %88 = arith.truncf %83 : vector<8x8xf32> to vector<8x8xbf16>
    %cst_29 = arith.constant dense<0.000000e+00> : vector<8x8xf32>
    %89 = tpu.matmul %88, %77, %cst_29 {dimension_numbers = #tpu.dot_dimension_numbers<[1], [0], [0], [1], [0, 0, 1, 1], [], []>} : vector<8x8xbf16>, vector<8x8xbf16>, vector<8x8xf32> -> vector<8x8xf32>
    %90 = vector.broadcast %87 : vector<8x1xf32> to vector<8x8xf32>
    %91 = arith.mulf %89, %90 : vector<8x8xf32>
    %92 = arith.truncf %91 : vector<8x8xf32> to vector<8x8xbf16>
    %93 = tpu.concatenate %74, %92 in 1 : vector<8x8xbf16>, vector<8x8xbf16> -> vector<8x16xbf16>
    %c0_30 = arith.constant 0 : index
    %c16 = arith.constant 16 : index
    %94 = vector.load %arg17[%c0_30, %c16] : memref<8x32xbf16, #tpu.memory_space<vmem>>, vector<8x16xbf16>
    tpu.vector_store %arg17[%c0_30, %c16], %93 {strides = array<i32>} : memref<8x32xbf16, #tpu.memory_space<vmem>>, vector<8x16xbf16>,
    %c0_31 = arith.constant 0 : index
    %c0_32 = arith.constant 0 : index
    %95 = vector.load %arg17[%c0_31, %c0_32] : memref<8x32xbf16, #tpu.memory_space<vmem>>, vector<8x32xbf16>
    %c0_33 = arith.constant 0 : index
    %c0_34 = arith.constant 0 : index
    %c0_35 = arith.constant 0 : index
    %96 = vector.load %arg5[%c0_33, %c0_34, %c0_35] : memref<1x32x32xbf16, #tpu.memory_space<vmem>>, vector<1x32x32xbf16>
    %97 = vector.shape_cast %96 : vector<1x32x32xbf16> to vector<32x32xbf16>
    %cst_36 = arith.constant dense<0.000000e+00> : vector<8x32xf32>
    %98 = tpu.matmul %95, %97, %cst_36 {dimension_numbers = #tpu.dot_dimension_numbers<[1], [0], [0], [1], [0, 0, 1, 1], [], []>} : vector<8x32xbf16>, vector<32x32xbf16>, vector<8x32xf32> -> vector<8x32xf32>
    %c0_37 = arith.constant 0 : index
    %c0_38 = arith.constant 0 : index
    %c0_39 = arith.constant 0 : index
    %99 = vector.load %arg6[%c0_37, %c0_38, %c0_39] : memref<1x1x32xf32, #tpu.memory_space<vmem>>, vector<1x1x32xf32>
    %100 = vector.shape_cast %99 : vector<1x1x32xf32> to vector<1x32xf32>
    %101 = vector.broadcast %100 : vector<1x32xf32> to vector<8x32xf32>
    %102 = arith.addf %98, %101 : vector<8x32xf32>
    %103 = arith.addf %3, %102 : vector<8x32xf32>
    %cst_40 = arith.constant dense<0.000000e+00> : vector<8xf32>
    %104 = vector.multi_reduction <add>, %103, %cst_40 [1] : vector<8x32xf32> to vector<8xf32>
    %105 = vector.shape_cast %104 : vector<8xf32> to vector<8x1xf32>
    %cst_41 = arith.constant 3.200000e+01 : f32
    %106 = vector.broadcast %cst_41 : f32 to vector<8x1xf32>
    %107 = arith.divf %105, %106 : vector<8x1xf32>
    %108 = vector.broadcast %107 : vector<8x1xf32> to vector<8x32xf32>
    %109 = arith.subf %103, %108 : vector<8x32xf32>
    %110 = arith.mulf %109, %109 : vector<8x32xf32>
    %cst_42 = arith.constant dense<0.000000e+00> : vector<8xf32>
    %111 = vector.multi_reduction <add>, %110, %cst_42 [1] : vector<8x32xf32> to vector<8xf32>
    %112 = vector.shape_cast %111 : vector<8xf32> to vector<8x1xf32>
    %cst_43 = arith.constant 3.200000e+01 : f32
    %113 = vector.broadcast %cst_43 : f32 to vector<8x1xf32>
    %114 = arith.divf %112, %113 : vector<8x1xf32>
    %115 = vector.broadcast %107 : vector<8x1xf32> to vector<8x32xf32>
    %116 = arith.subf %103, %115 : vector<8x32xf32>
    %cst_44 = arith.constant 9.99999974E-6 : f32
    %117 = vector.broadcast %cst_44 : f32 to vector<8x1xf32>
    %118 = arith.addf %114, %117 : vector<8x1xf32>
    %119 = math.rsqrt %118 : vector<8x1xf32>
    %120 = vector.broadcast %119 : vector<8x1xf32> to vector<8x32xf32>
    %121 = arith.mulf %116, %120 : vector<8x32xf32>
    %c0_45 = arith.constant 0 : index
    %c0_46 = arith.constant 0 : index
    %c0_47 = arith.constant 0 : index
    %122 = vector.load %arg7[%c0_45, %c0_46, %c0_47] : memref<1x1x32xf32, #tpu.memory_space<vmem>>, vector<1x1x32xf32>
    %123 = vector.shape_cast %122 : vector<1x1x32xf32> to vector<1x32xf32>
    %124 = vector.broadcast %123 : vector<1x32xf32> to vector<8x32xf32>
    %125 = arith.mulf %121, %124 : vector<8x32xf32>
    %c0_48 = arith.constant 0 : index
    %c0_49 = arith.constant 0 : index
    %c0_50 = arith.constant 0 : index
    %126 = vector.load %arg8[%c0_48, %c0_49, %c0_50] : memref<1x1x32xf32, #tpu.memory_space<vmem>>, vector<1x1x32xf32>
    %127 = vector.shape_cast %126 : vector<1x1x32xf32> to vector<1x32xf32>
    %128 = vector.broadcast %127 : vector<1x32xf32> to vector<8x32xf32>
    %129 = arith.addf %125, %128 : vector<8x32xf32>
    %130 = arith.truncf %129 : vector<8x32xf32> to vector<8x32xbf16>
    %c0_51 = arith.constant 0 : index
    %c0_52 = arith.constant 0 : index
    %c0_53 = arith.constant 0 : index
    %131 = vector.load %arg9[%c0_51, %c0_52, %c0_53] : memref<1x32x64xbf16, #tpu.memory_space<vmem>>, vector<1x32x64xbf16>
    %132 = vector.shape_cast %131 : vector<1x32x64xbf16> to vector<32x64xbf16>
    %cst_54 = arith.constant dense<0.000000e+00> : vector<8x64xf32>
    %133 = tpu.matmul %130, %132, %cst_54 {dimension_numbers = #tpu.dot_dimension_numbers<[1], [0], [0], [1], [0, 0, 1, 1], [], []>} : vector<8x32xbf16>, vector<32x64xbf16>, vector<8x64xf32> -> vector<8x64xf32>
    %c0_55 = arith.constant 0 : index
    %c0_56 = arith.constant 0 : index
    %c0_57 = arith.constant 0 : index
    %134 = vector.load %arg10[%c0_55, %c0_56, %c0_57] : memref<1x1x64xf32, #tpu.memory_space<vmem>>, vector<1x1x64xf32>
    %135 = vector.shape_cast %134 : vector<1x1x64xf32> to vector<1x64xf32>
    %136 = vector.broadcast %135 : vector<1x64xf32> to vector<8x64xf32>
    %137 = arith.addf %133, %136 : vector<8x64xf32>
    %138 = arith.mulf %137, %137 : vector<8x64xf32>
    %139 = arith.mulf %137, %138 : vector<8x64xf32>
    %cst_58 = arith.constant 4.471500e-02 : f32
    %140 = vector.broadcast %cst_58 : f32 to vector<8x64xf32>
    %141 = arith.mulf %140, %139 : vector<8x64xf32>
    %142 = arith.addf %137, %141 : vector<8x64xf32>
    %cst_59 = arith.constant 0.797884583 : f32
    %143 = vector.broadcast %cst_59 : f32 to vector<8x64xf32>
    %144 = arith.mulf %143, %142 : vector<8x64xf32>
    %145 = math.tanh %144 : vector<8x64xf32>
    %cst_60 = arith.constant 1.000000e+00 : f32
    %146 = vector.broadcast %cst_60 : f32 to vector<8x64xf32>
    %147 = arith.addf %146, %145 : vector<8x64xf32>
    %cst_61 = arith.constant 5.000000e-01 : f32
    %148 = vector.broadcast %cst_61 : f32 to vector<8x64xf32>
    %149 = arith.mulf %148, %147 : vector<8x64xf32>
    %150 = arith.mulf %137, %149 : vector<8x64xf32>
    %151 = arith.truncf %150 : vector<8x64xf32> to vector<8x64xbf16>
    %c0_62 = arith.constant 0 : index
    %c0_63 = arith.constant 0 : index
    %c0_64 = arith.constant 0 : index
    %152 = vector.load %arg11[%c0_62, %c0_63, %c0_64] : memref<1x64x32xbf16, #tpu.memory_space<vmem>>, vector<1x64x32xbf16>
    %153 = vector.shape_cast %152 : vector<1x64x32xbf16> to vector<64x32xbf16>
    %cst_65 = arith.constant dense<0.000000e+00> : vector<8x32xf32>
    %154 = tpu.matmul %151, %153, %cst_65 {dimension_numbers = #tpu.dot_dimension_numbers<[1], [0], [0], [1], [0, 0, 1, 1], [], []>} : vector<8x64xbf16>, vector<64x32xbf16>, vector<8x32xf32> -> vector<8x32xf32>
    %c0_66 = arith.constant 0 : index
    %c0_67 = arith.constant 0 : index
    %c0_68 = arith.constant 0 : index
    %155 = vector.load %arg12[%c0_66, %c0_67, %c0_68] : memref<1x1x32xf32, #tpu.memory_space<vmem>>, vector<1x1x32xf32>
    %156 = vector.shape_cast %155 : vector<1x1x32xf32> to vector<1x32xf32>
    %157 = vector.broadcast %156 : vector<1x32xf32> to vector<8x32xf32>
    %158 = arith.addf %154, %157 : vector<8x32xf32>
    %159 = arith.addf %129, %158 : vector<8x32xf32>
    %cst_69 = arith.constant dense<0.000000e+00> : vector<8xf32>
    %160 = vector.multi_reduction <add>, %159, %cst_69 [1] : vector<8x32xf32> to vector<8xf32>
    %161 = vector.shape_cast %160 : vector<8xf32> to vector<8x1xf32>
    %cst_70 = arith.constant 3.200000e+01 : f32
    %162 = vector.broadcast %cst_70 : f32 to vector<8x1xf32>
    %163 = arith.divf %161, %162 : vector<8x1xf32>
    %164 = vector.broadcast %163 : vector<8x1xf32> to vector<8x32xf32>
    %165 = arith.subf %159, %164 : vector<8x32xf32>
    %166 = arith.mulf %165, %165 : vector<8x32xf32>
    %cst_71 = arith.constant dense<0.000000e+00> : vector<8xf32>
    %167 = vector.multi_reduction <add>, %166, %cst_71 [1] : vector<8x32xf32> to vector<8xf32>
    %168 = vector.shape_cast %167 : vector<8xf32> to vector<8x1xf32>
    %cst_72 = arith.constant 3.200000e+01 : f32
    %169 = vector.broadcast %cst_72 : f32 to vector<8x1xf32>
    %170 = arith.divf %168, %169 : vector<8x1xf32>
    %171 = vector.broadcast %163 : vector<8x1xf32> to vector<8x32xf32>
    %172 = arith.subf %159, %171 : vector<8x32xf32>
    %cst_73 = arith.constant 9.99999974E-6 : f32
    %173 = vector.broadcast %cst_73 : f32 to vector<8x1xf32>
    %174 = arith.addf %170, %173 : vector<8x1xf32>
    %175 = math.rsqrt %174 : vector<8x1xf32>
    %176 = vector.broadcast %175 : vector<8x1xf32> to vector<8x32xf32>
    %177 = arith.mulf %172, %176 : vector<8x32xf32>
    %c0_74 = arith.constant 0 : index
    %c0_75 = arith.constant 0 : index
    %c0_76 = arith.constant 0 : index
    %178 = vector.load %arg13[%c0_74, %c0_75, %c0_76] : memref<1x1x32xf32, #tpu.memory_space<vmem>>, vector<1x1x32xf32>
    %179 = vector.shape_cast %178 : vector<1x1x32xf32> to vector<1x32xf32>
    %180 = vector.broadcast %179 : vector<1x32xf32> to vector<8x32xf32>
    %181 = arith.mulf %177, %180 : vector<8x32xf32>
    %c0_77 = arith.constant 0 : index
    %c0_78 = arith.constant 0 : index
    %c0_79 = arith.constant 0 : index
    %182 = vector.load %arg14[%c0_77, %c0_78, %c0_79] : memref<1x1x32xf32, #tpu.memory_space<vmem>>, vector<1x1x32xf32>
    %183 = vector.shape_cast %182 : vector<1x1x32xf32> to vector<1x32xf32>
    %184 = vector.broadcast %183 : vector<1x32xf32> to vector<8x32xf32>
    %185 = arith.addf %181, %184 : vector<8x32xf32>
    %c0_80 = arith.constant 0 : index
    %c0_81 = arith.constant 0 : index
    %186 = vector.load %arg16[%c0_80, %c0_81] : memref<8x32xf32, #tpu.memory_space<vmem>>, vector<8x32xf32>
    tpu.vector_store %arg16[%c0_80, %c0_81], %185 {strides = array<i32>} : memref<8x32xf32, #tpu.memory_space<vmem>>, vector<8x32xf32>,
    %187 = vector.shape_cast %185 : vector<8x32xf32> to vector<1x8x32xf32>
    %c0_82 = arith.constant 0 : index
    %c0_83 = arith.constant 0 : index
    %c0_84 = arith.constant 0 : index
    %188 = vector.load %arg15[%c0_82, %c0_83, %c0_84] : memref<1x8x32xf32, #tpu.memory_space<vmem>>, vector<1x8x32xf32>
    tpu.vector_store %arg15[%c0_82, %c0_83, %c0_84], %187 {strides = array<i32>} : memref<1x8x32xf32, #tpu.memory_space<vmem>>, vector<1x8x32xf32>,
    return
  }
  func.func @transform_0(%arg0: i32, %arg1: i32) -> (i32, i32, i32) {
    %c0_i32 = arith.constant 0 : i32
    %c0_i32_0 = arith.constant 0 : i32
    %c0_i32_1 = arith.constant 0 : i32
    return %arg0, %c0_i32, %c0_i32_0 : i32, i32, i32
  }
  func.func @transform_1(%arg0: i32, %arg1: i32) -> (i32, i32, i32) {
    %c0_i32 = arith.constant 0 : i32
    %c0_i32_0 = arith.constant 0 : i32
    %c0_i32_1 = arith.constant 0 : i32
    return %arg1, %c0_i32, %c0_i32_0 : i32, i32, i32
  }
  func.func @transform_2(%arg0: i32, %arg1: i32) -> (i32, i32, i32) {
    %c0_i32 = arith.constant 0 : i32
    %c0_i32_0 = arith.constant 0 : i32
    %c0_i32_1 = arith.constant 0 : i32
    return %arg1, %c0_i32, %c0_i32_0 : i32, i32, i32
  }
  func.func @transform_3(%arg0: i32, %arg1: i32) -> (i32, i32, i32) {
    %c0_i32 = arith.constant 0 : i32
    %c0_i32_0 = arith.constant 0 : i32
    %c0_i32_1 = arith.constant 0 : i32
    return %arg1, %c0_i32, %c0_i32_0 : i32, i32, i32
  }
  func.func @transform_4(%arg0: i32, %arg1: i32) -> (i32, i32, i32) {
    %c0_i32 = arith.constant 0 : i32
    %c0_i32_0 = arith.constant 0 : i32
    %c0_i32_1 = arith.constant 0 : i32
    return %arg1, %c0_i32, %c0_i32_0 : i32, i32, i32
  }
  func.func @transform_5(%arg0: i32, %arg1: i32) -> (i32, i32, i32) {
    %c0_i32 = arith.constant 0 : i32
    %c0_i32_0 = arith.constant 0 : i32
    %c0_i32_1 = arith.constant 0 : i32
    return %arg1, %c0_i32, %c0_i32_0 : i32, i32, i32
  }
  func.func @transform_6(%arg0: i32, %arg1: i32) -> (i32, i32, i32) {
    %c0_i32 = arith.constant 0 : i32
    %c0_i32_0 = arith.constant 0 : i32
    %c0_i32_1 = arith.constant 0 : i32
    return %arg1, %c0_i32, %c0_i32_0 : i32, i32, i32
  }
  func.func @transform_7(%arg0: i32, %arg1: i32) -> (i32, i32, i32) {
    %c0_i32 = arith.constant 0 : i32
    %c0_i32_0 = arith.constant 0 : i32
    %c0_i32_1 = arith.constant 0 : i32
    return %arg1, %c0_i32, %c0_i32_0 : i32, i32, i32
  }
  func.func @transform_8(%arg0: i32, %arg1: i32) -> (i32, i32, i32) {
    %c0_i32 = arith.constant 0 : i32
    %c0_i32_0 = arith.constant 0 : i32
    %c0_i32_1 = arith.constant 0 : i32
    return %arg1, %c0_i32, %c0_i32_0 : i32, i32, i32
  }
  func.func @transform_9(%arg0: i32, %arg1: i32) -> (i32, i32, i32) {
    %c0_i32 = arith.constant 0 : i32
    %c0_i32_0 = arith.constant 0 : i32
    %c0_i32_1 = arith.constant 0 : i32
    return %arg1, %c0_i32, %c0_i32_0 : i32, i32, i32
  }
  func.func @transform_10(%arg0: i32, %arg1: i32) -> (i32, i32, i32) {
    %c0_i32 = arith.constant 0 : i32
    %c0_i32_0 = arith.constant 0 : i32
    %c0_i32_1 = arith.constant 0 : i32
    return %arg1, %c0_i32, %c0_i32_0 : i32, i32, i32
  }
  func.func @transform_11(%arg0: i32, %arg1: i32) -> (i32, i32, i32) {
    %c0_i32 = arith.constant 0 : i32
    %c0_i32_0 = arith.constant 0 : i32
    %c0_i32_1 = arith.constant 0 : i32
    return %arg1, %c0_i32, %c0_i32_0 : i32, i32, i32
  }
  func.func @transform_12(%arg0: i32, %arg1: i32) -> (i32, i32, i32) {
    %c0_i32 = arith.constant 0 : i32
    %c0_i32_0 = arith.constant 0 : i32
    %c0_i32_1 = arith.constant 0 : i32
    return %arg1, %c0_i32, %c0_i32_0 : i32, i32, i32
  }
  func.func @transform_13(%arg0: i32, %arg1: i32) -> (i32, i32, i32) {
    %c0_i32 = arith.constant 0 : i32
    %c0_i32_0 = arith.constant 0 : i32
    %c0_i32_1 = arith.constant 0 : i32
    return %arg0, %c0_i32, %c0_i32_0 : i32, i32, i32
  }
}

</mosaic_0001>

<llo_original>
// kernel: tpu_custom_call.1
$region0: #{tpu_custom_call.1}
  #allocation0 [shape = 'u32[]', space=smem, size = 0x4, offset = 0x4, fixed_abs, tag = 'smem constant byte address 0x4 - core index']
  #allocation1 [shape = 'u32[144,128]{1,0:T(1,128)}', space=vmem, size = 0x12000, scoped, tag = 'internal scratch']
  #allocation2 [shape = 'f32[8,32]{1,0:T(8,128)}', space=vmem, size = 0x1000, scoped, tag = 'scratch operand']
  #allocation3 [shape = 'bf16[8,32]{1,0:T(8,128)(2,1)}', space=vmem, size = 0x800, scoped, tag = 'scratch operand']
  %s0 = inlined_call_operand.hbm [shape: f32[2,8,32], index: 0, kind: input, shape index: {}]
  %s1 = inlined_call_operand.vmem [shape: bf16[2,32,96], index: 1, kind: input, shape index: {}]
  %s2 = inlined_call_operand.vmem [shape: f32[2,1,96], index: 2, kind: input, shape index: {}]
  %s3 = inlined_call_operand.vmem [shape: bf16[2,32,32], index: 3, kind: input, shape index: {}]
  %s4 = inlined_call_operand.vmem [shape: f32[2,1,32], index: 4, kind: input, shape index: {}]
  %s5 = inlined_call_operand.vmem [shape: f32[2,1,32], index: 5, kind: input, shape index: {}]
  %s6 = inlined_call_operand.vmem [shape: f32[2,1,32], index: 6, kind: input, shape index: {}]
  %s7 = inlined_call_operand.vmem [shape: bf16[2,32,64], index: 7, kind: input, shape index: {}]
  %s8 = inlined_call_operand.vmem [shape: f32[2,1,64], index: 8, kind: input, shape index: {}]
  %s9 = inlined_call_operand.vmem [shape: bf16[2,64,32], index: 9, kind: input, shape index: {}]
  %s10 = inlined_call_operand.vmem [shape: f32[2,1,32], index: 10, kind: input, shape index: {}]
  %s11 = inlined_call_operand.vmem [shape: f32[2,1,32], index: 11, kind: input, shape index: {}]
  %s12 = inlined_call_operand.vmem [shape: f32[2,1,32], index: 12, kind: input, shape index: {}]
  %s13 = inlined_call_operand.hbm [shape: f32[2,8,32], index: 13, kind: output, shape index: {}]
  %s14 = sld [smem:[#allocation0]]
  $region93: #{tpu_custom_call.1} parent=0
    _
  %s16 = ssub.s32 1, %s14
  %s17 = scalar_select 0, %s16, %s14
  $region1: #{tpu_custom_call.1} parent=0
    #allocation4 [shape = 'u8[8192]{0}', space=vmem, size = 0x2000, scoped, tag = 'input window, operand 0']
    #allocation5 [shape = 's32[2]{0}', space=sflag, size = 0x8, scoped, tag = 'scoped memory for tpu_custom_call.1']
    #allocation6 [shape = 's32[2]{0}', space=sflag, size = 0x8, scoped, tag = 'scoped memory for tpu_custom_call.1']
    #allocation7 [shape = 'u8[8192]{0}', space=vmem, size = 0x2000, scoped, tag = 'output window, operand 0']
    %18 = vsyncpa [#allocation5], 0
    %s19 = scalar_lea.sflag [#allocation5], 1
    %20 = vsyncpa %s19, 0
    %21 = vsyncpa [#allocation6], 0
    %s22 = scalar_lea.sflag [#allocation6], 1
    %23 = vsyncpa %s22, 0
    loop: start=0, step=1, limit=6
    $region2: #{tpu_custom_call.1} parent=1 // loop_pre_header
      _
    $region3: #{tpu_custom_call.1} parent=1 // loop_header
      %s25 = sphi 0, %s29
      %p26 = scmp.ge.s32.totalorder %s25, 6
      %s32 = sphi 0, %s44
      %s33 = sphi 0, %s40
      %s34 = sphi 0, %s32
      %s35 = sphi 0, %s33
      %s36 = sphi 0, %s34
      %s37 = sphi 0, %s35
      %s47 = sphi 0, %s49
      %s50 = sphi 0, %s47
      %s51 = sphi 0, %s50
      %s67 = sphi 0, %s51
      %s73 = sphi 0, %s75
      %s76 = sphi 0, %s73
      %s77 = sphi 0, %s76
      %s93 = sphi 0, %s77
      %s99 = sphi 0, %s101
      %s102 = sphi 0, %s99
      %s103 = sphi 0, %s102
      %s119 = sphi 0, %s103
      %s125 = sphi 0, %s127
      %s128 = sphi 0, %s125
      %s129 = sphi 0, %s128
      %s145 = sphi 0, %s129
      %s151 = sphi 0, %s153
      %s154 = sphi 0, %s151
      %s155 = sphi 0, %s154
      %s171 = sphi 0, %s155
      %s177 = sphi 0, %s179
      %s180 = sphi 0, %s177
      %s181 = sphi 0, %s180
      %s197 = sphi 0, %s181
      %s203 = sphi 0, %s205
      %s206 = sphi 0, %s203
      %s207 = sphi 0, %s206
      %s223 = sphi 0, %s207
      %s229 = sphi 0, %s231
      %s232 = sphi 0, %s229
      %s233 = sphi 0, %s232
      %s249 = sphi 0, %s233
      %s255 = sphi 0, %s257
      %s258 = sphi 0, %s255
      %s259 = sphi 0, %s258
      %s275 = sphi 0, %s259
      %s281 = sphi 0, %s283
      %s284 = sphi 0, %s281
      %s285 = sphi 0, %s284
      %s301 = sphi 0, %s285
      %s307 = sphi 0, %s309
      %s310 = sphi 0, %s307
      %s311 = sphi 0, %s310
      %s327 = sphi 0, %s311
      %s333 = sphi 0, %s335
      %s336 = sphi 0, %s333
      %s337 = sphi 0, %s336
      %s353 = sphi 0, %s337
      %s359 = sphi 0, %s361
      %s362 = sphi 0, %s359
      %s363 = sphi 0, %s362
      %s379 = sphi 0, %s363
      %s385 = sphi 0, %s387
      %s388 = sphi 0, %s385
      %s389 = sphi 0, %s388
      %s405 = sphi 0, %s389
    $region4: #{tpu_custom_call.1} parent=1 // loop_header_branch
      %28 = sbr.rel (%p26) target = $region8
    $region5: #{tpu_custom_call.1} parent=1 // loop_body
      %s30 = ssub.s32 %s25, 1
      %s31 = ssub.s32 %s25, 2
      %s38 = sadd.s32 1, %s33
      %p39 = scmp.ge.s32.totalorder %s38, 2
      %s40 = scalar_select %p39, 0, %s38
      %s41 = sadd.s32 1, %s32
      %s42 = scalar_select %p39, %s41, %s32
      %p43 = scmp.ge.s32.totalorder %s42, 2
      %s44 = scalar_select %p43, 0, %s42
      %s45 = ssub.s32 %s32, %s44
      %p46 = scmp.eq.s32.totalorder %s45, 0
      %s48 = sadd.s32 %s47, 1
      %s49 = scalar_select %p46, %s47, %s48
      %p52 = pneg %p46
      %p53 = scmp.eq.s32.totalorder %s25, 3
      %p54 = por %p52, %p53
      %p55 = scmp.ne.s32.totalorder %s47, %s50
      %p56 = scmp.eq.s32.totalorder %s25, 0
      %p57 = por %p55, %p56
      %p58 = scmp.ne.s32.totalorder %s47, %s50
      %p59 = scmp.eq.s32.totalorder %s30, 3
      %p60 = por %p58, %p59
      %p61 = scmp.ne.s32.totalorder %s50, %s51
      %p62 = scmp.eq.s32.totalorder %s30, 0
      %p63 = por %p61, %p62
      %p64 = scmp.ne.s32.totalorder %s50, %s51
      %p65 = scmp.eq.s32.totalorder %s31, 3
      %p66 = por %p64, %p65
      %p68 = scmp.ne.s32.totalorder %s51, %s67
      %p69 = scmp.eq.s32.totalorder %s31, 0
      %p70 = por %p68, %p69
      %s71 = ssub.s32 %s33, %s40
      %p72 = scmp.eq.s32.totalorder %s71, 0
      %s74 = sadd.s32 %s73, 1
      %s75 = scalar_select %p72, %s73, %s74
      %p78 = pneg %p72
      %p79 = scmp.eq.s32.totalorder %s25, 3
      %p80 = por %p78, %p79
      %p81 = scmp.ne.s32.totalorder %s73, %s76
      %p82 = scmp.eq.s32.totalorder %s25, 0
      %p83 = por %p81, %p82
      %p84 = scmp.ne.s32.totalorder %s73, %s76
      %p85 = scmp.eq.s32.totalorder %s30, 3
      %p86 = por %p84, %p85
      %p87 = scmp.ne.s32.totalorder %s76, %s77
      %p88 = scmp.eq.s32.totalorder %s30, 0
      %p89 = por %p87, %p88
      %p90 = scmp.ne.s32.totalorder %s76, %s77
      %p91 = scmp.eq.s32.totalorder %s31, 3
      %p92 = por %p90, %p91
      %p94 = scmp.ne.s32.totalorder %s77, %s93
      %p95 = scmp.eq.s32.totalorder %s31, 0
      %p96 = por %p94, %p95
      %s97 = ssub.s32 %s33, %s40
      %p98 = scmp.eq.s32.totalorder %s97, 0
      %s100 = sadd.s32 %s99, 1
      %s101 = scalar_select %p98, %s99, %s100
      %p104 = pneg %p98
      %p105 = scmp.eq.s32.totalorder %s25, 3
      %p106 = por %p104, %p105
      %p107 = scmp.ne.s32.totalorder %s99, %s102
      %p108 = scmp.eq.s32.totalorder %s25, 0
      %p109 = por %p107, %p108
      %p110 = scmp.ne.s32.totalorder %s99, %s102
      %p111 = scmp.eq.s32.totalorder %s30, 3
      %p112 = por %p110, %p111
      %p113 = scmp.ne.s32.totalorder %s102, %s103
      %p114 = scmp.eq.s32.totalorder %s30, 0
      %p115 = por %p113, %p114
      %p116 = scmp.ne.s32.totalorder %s102, %s103
      %p117 = scmp.eq.s32.totalorder %s31, 3
      %p118 = por %p116, %p117
      %p120 = scmp.ne.s32.totalorder %s103, %s119
      %p121 = scmp.eq.s32.totalorder %s31, 0
      %p122 = por %p120, %p121
      %s123 = ssub.s32 %s33, %s40
      %p124 = scmp.eq.s32.totalorder %s123, 0
      %s126 = sadd.s32 %s125, 1
      %s127 = scalar_select %p124, %s125, %s126
      %p130 = pneg %p124
      %p131 = scmp.eq.s32.totalorder %s25, 3
      %p132 = por %p130, %p131
      %p133 = scmp.ne.s32.totalorder %s125, %s128
      %p134 = scmp.eq.s32.totalorder %s25, 0
      %p135 = por %p133, %p134
      %p136 = scmp.ne.s32.totalorder %s125, %s128
      %p137 = scmp.eq.s32.totalorder %s30, 3
      %p138 = por %p136, %p137
      %p139 = scmp.ne.s32.totalorder %s128, %s129
      %p140 = scmp.eq.s32.totalorder %s30, 0
      %p141 = por %p139, %p140
      %p142 = scmp.ne.s32.totalorder %s128, %s129
      %p143 = scmp.eq.s32.totalorder %s31, 3
      %p144 = por %p142, %p143
      %p146 = scmp.ne.s32.totalorder %s129, %s145
      %p147 = scmp.eq.s32.totalorder %s31, 0
      %p148 = por %p146, %p147
      %s149 = ssub.s32 %s33, %s40
      %p150 = scmp.eq.s32.totalorder %s149, 0
      %s152 = sadd.s32 %s151, 1
      %s153 = scalar_select %p150, %s151, %s152
      %p156 = pneg %p150
      %p157 = scmp.eq.s32.totalorder %s25, 3
      %p158 = por %p156, %p157
      %p159 = scmp.ne.s32.totalorder %s151, %s154
      %p160 = scmp.eq.s32.totalorder %s25, 0
      %p161 = por %p159, %p160
      %p162 = scmp.ne.s32.totalorder %s151, %s154
      %p163 = scmp.eq.s32.totalorder %s30, 3
      %p164 = por %p162, %p163
      %p165 = scmp.ne.s32.totalorder %s154, %s155
      %p166 = scmp.eq.s32.totalorder %s30, 0
      %p167 = por %p165, %p166
      %p168 = scmp.ne.s32.totalorder %s154, %s155
      %p169 = scmp.eq.s32.totalorder %s31, 3
      %p170 = por %p168, %p169
      %p172 = scmp.ne.s32.totalorder %s155, %s171
      %p173 = scmp.eq.s32.totalorder %s31, 0
      %p174 = por %p172, %p173
      %s175 = ssub.s32 %s33, %s40
      %p176 = scmp.eq.s32.totalorder %s175, 0
      %s178 = sadd.s32 %s177, 1
      %s179 = scalar_select %p176, %s177, %s178
      %p182 = pneg %p176
      %p183 = scmp.eq.s32.totalorder %s25, 3
      %p184 = por %p182, %p183
      %p185 = scmp.ne.s32.totalorder %s177, %s180
      %p186 = scmp.eq.s32.totalorder %s25, 0
      %p187 = por %p185, %p186
      %p188 = scmp.ne.s32.totalorder %s177, %s180
      %p189 = scmp.eq.s32.totalorder %s30, 3
      %p190 = por %p188, %p189
      %p191 = scmp.ne.s32.totalorder %s180, %s181
      %p192 = scmp.eq.s32.totalorder %s30, 0
      %p193 = por %p191, %p192
      %p194 = scmp.ne.s32.totalorder %s180, %s181
      %p195 = scmp.eq.s32.totalorder %s31, 3
      %p196 = por %p194, %p195
      %p198 = scmp.ne.s32.totalorder %s181, %s197
      %p199 = scmp.eq.s32.totalorder %s31, 0
      %p200 = por %p198, %p199
      %s201 = ssub.s32 %s33, %s40
      %p202 = scmp.eq.s32.totalorder %s201, 0
      %s204 = sadd.s32 %s203, 1
      %s205 = scalar_select %p202, %s203, %s204
      %p208 = pneg %p202
      %p209 = scmp.eq.s32.totalorder %s25, 3
      %p210 = por %p208, %p209
      %p211 = scmp.ne.s32.totalorder %s203, %s206
      %p212 = scmp.eq.s32.totalorder %s25, 0
      %p213 = por %p211, %p212
      %p214 = scmp.ne.s32.totalorder %s203, %s206
      %p215 = scmp.eq.s32.totalorder %s30, 3
      %p216 = por %p214, %p215
      %p217 = scmp.ne.s32.totalorder %s206, %s207
      %p218 = scmp.eq.s32.totalorder %s30, 0
      %p219 = por %p217, %p218
      %p220 = scmp.ne.s32.totalorder %s206, %s207
      %p221 = scmp.eq.s32.totalorder %s31, 3
      %p222 = por %p220, %p221
      %p224 = scmp.ne.s32.totalorder %s207, %s223
      %p225 = scmp.eq.s32.totalorder %s31, 0
      %p226 = por %p224, %p225
      %s227 = ssub.s32 %s33, %s40
      %p228 = scmp.eq.s32.totalorder %s227, 0
      %s230 = sadd.s32 %s229, 1
      %s231 = scalar_select %p228, %s229, %s230
      %p234 = pneg %p228
      %p235 = scmp.eq.s32.totalorder %s25, 3
      %p236 = por %p234, %p235
      %p237 = scmp.ne.s32.totalorder %s229, %s232
      %p238 = scmp.eq.s32.totalorder %s25, 0
      %p239 = por %p237, %p238
      %p240 = scmp.ne.s32.totalorder %s229, %s232
      %p241 = scmp.eq.s32.totalorder %s30, 3
      %p242 = por %p240, %p241
      %p243 = scmp.ne.s32.totalorder %s232, %s233
      %p244 = scmp.eq.s32.totalorder %s30, 0
      %p245 = por %p243, %p244
      %p246 = scmp.ne.s32.totalorder %s232, %s233
      %p247 = scmp.eq.s32.totalorder %s31, 3
      %p248 = por %p246, %p247
      %p250 = scmp.ne.s32.totalorder %s233, %s249
      %p251 = scmp.eq.s32.totalorder %s31, 0
      %p252 = por %p250, %p251
      %s253 = ssub.s32 %s33, %s40
      %p254 = scmp.eq.s32.totalorder %s253, 0
      %s256 = sadd.s32 %s255, 1
      %s257 = scalar_select %p254, %s255, %s256
      %p260 = pneg %p254
      %p261 = scmp.eq.s32.totalorder %s25, 3
      %p262 = por %p260, %p261
      %p263 = scmp.ne.s32.totalorder %s255, %s258
      %p264 = scmp.eq.s32.totalorder %s25, 0
      %p265 = por %p263, %p264
      %p266 = scmp.ne.s32.totalorder %s255, %s258
      %p267 = scmp.eq.s32.totalorder %s30, 3
      %p268 = por %p266, %p267
      %p269 = scmp.ne.s32.totalorder %s258, %s259
      %p270 = scmp.eq.s32.totalorder %s30, 0
      %p271 = por %p269, %p270
      %p272 = scmp.ne.s32.totalorder %s258, %s259
      %p273 = scmp.eq.s32.totalorder %s31, 3
      %p274 = por %p272, %p273
      %p276 = scmp.ne.s32.totalorder %s259, %s275
      %p277 = scmp.eq.s32.totalorder %s31, 0
      %p278 = por %p276, %p277
      %s279 = ssub.s32 %s33, %s40
      %p280 = scmp.eq.s32.totalorder %s279, 0
      %s282 = sadd.s32 %s281, 1
      %s283 = scalar_select %p280, %s281, %s282
      %p286 = pneg %p280
      %p287 = scmp.eq.s32.totalorder %s25, 3
      %p288 = por %p286, %p287
      %p289 = scmp.ne.s32.totalorder %s281, %s284
      %p290 = scmp.eq.s32.totalorder %s25, 0
      %p291 = por %p289, %p290
      %p292 = scmp.ne.s32.totalorder %s281, %s284
      %p293 = scmp.eq.s32.totalorder %s30, 3
      %p294 = por %p292, %p293
      %p295 = scmp.ne.s32.totalorder %s284, %s285
      %p296 = scmp.eq.s32.totalorder %s30, 0
      %p297 = por %p295, %p296
      %p298 = scmp.ne.s32.totalorder %s284, %s285
      %p299 = scmp.eq.s32.totalorder %s31, 3
      %p300 = por %p298, %p299
      %p302 = scmp.ne.s32.totalorder %s285, %s301
      %p303 = scmp.eq.s32.totalorder %s31, 0
      %p304 = por %p302, %p303
      %s305 = ssub.s32 %s33, %s40
      %p306 = scmp.eq.s32.totalorder %s305, 0
      %s308 = sadd.s32 %s307, 1
      %s309 = scalar_select %p306, %s307, %s308
      %p312 = pneg %p306
      %p313 = scmp.eq.s32.totalorder %s25, 3
      %p314 = por %p312, %p313
      %p315 = scmp.ne.s32.totalorder %s307, %s310
      %p316 = scmp.eq.s32.totalorder %s25, 0
      %p317 = por %p315, %p316
      %p318 = scmp.ne.s32.totalorder %s307, %s310
      %p319 = scmp.eq.s32.totalorder %s30, 3
      %p320 = por %p318, %p319
      %p321 = scmp.ne.s32.totalorder %s310, %s311
      %p322 = scmp.eq.s32.totalorder %s30, 0
      %p323 = por %p321, %p322
      %p324 = scmp.ne.s32.totalorder %s310, %s311
      %p325 = scmp.eq.s32.totalorder %s31, 3
      %p326 = por %p324, %p325
      %p328 = scmp.ne.s32.totalorder %s311, %s327
      %p329 = scmp.eq.s32.totalorder %s31, 0
      %p330 = por %p328, %p329
      %s331 = ssub.s32 %s33, %s40
      %p332 = scmp.eq.s32.totalorder %s331, 0
      %s334 = sadd.s32 %s333, 1
      %s335 = scalar_select %p332, %s333, %s334
      %p338 = pneg %p332
      %p339 = scmp.eq.s32.totalorder %s25, 3
      %p340 = por %p338, %p339
      %p341 = scmp.ne.s32.totalorder %s333, %s336
      %p342 = scmp.eq.s32.totalorder %s25, 0
      %p343 = por %p341, %p342
      %p344 = scmp.ne.s32.totalorder %s333, %s336
      %p345 = scmp.eq.s32.totalorder %s30, 3
      %p346 = por %p344, %p345
      %p347 = scmp.ne.s32.totalorder %s336, %s337
      %p348 = scmp.eq.s32.totalorder %s30, 0
      %p349 = por %p347, %p348
      %p350 = scmp.ne.s32.totalorder %s336, %s337
      %p351 = scmp.eq.s32.totalorder %s31, 3
      %p352 = por %p350, %p351
      %p354 = scmp.ne.s32.totalorder %s337, %s353
      %p355 = scmp.eq.s32.totalorder %s31, 0
      %p356 = por %p354, %p355
      %s357 = ssub.s32 %s33, %s40
      %p358 = scmp.eq.s32.totalorder %s357, 0
      %s360 = sadd.s32 %s359, 1
      %s361 = scalar_select %p358, %s359, %s360
      %p364 = pneg %p358
      %p365 = scmp.eq.s32.totalorder %s25, 3
      %p366 = por %p364, %p365
      %p367 = scmp.ne.s32.totalorder %s359, %s362
      %p368 = scmp.eq.s32.totalorder %s25, 0
      %p369 = por %p367, %p368
      %p370 = scmp.ne.s32.totalorder %s359, %s362
      %p371 = scmp.eq.s32.totalorder %s30, 3
      %p372 = por %p370, %p371
      %p373 = scmp.ne.s32.totalorder %s362, %s363
      %p374 = scmp.eq.s32.totalorder %s30, 0
      %p375 = por %p373, %p374
      %p376 = scmp.ne.s32.totalorder %s362, %s363
      %p377 = scmp.eq.s32.totalorder %s31, 3
      %p378 = por %p376, %p377
      %p380 = scmp.ne.s32.totalorder %s363, %s379
      %p381 = scmp.eq.s32.totalorder %s31, 0
      %p382 = por %p380, %p381
      %s383 = ssub.s32 %s32, %s44
      %p384 = scmp.eq.s32.totalorder %s383, 0
      %s386 = sadd.s32 %s385, 1
      %s387 = scalar_select %p384, %s385, %s386
      %p390 = pneg %p384
      %p391 = scmp.eq.s32.totalorder %s25, 3
      %p392 = por %p390, %p391
      %p393 = scmp.ne.s32.totalorder %s385, %s388
      %p394 = scmp.eq.s32.totalorder %s25, 0
      %p395 = por %p393, %p394
      %p396 = scmp.ne.s32.totalorder %s385, %s388
      %p397 = scmp.eq.s32.totalorder %s30, 3
      %p398 = por %p396, %p397
      %p399 = scmp.ne.s32.totalorder %s388, %s389
      %p400 = scmp.eq.s32.totalorder %s30, 0
      %p401 = por %p399, %p400
      %p402 = scmp.ne.s32.totalorder %s388, %s389
      %p403 = scmp.eq.s32.totalorder %s31, 3
      %p404 = por %p402, %p403
      %p406 = scmp.ne.s32.totalorder %s389, %s405
      %p407 = scmp.eq.s32.totalorder %s31, 0
      %p408 = por %p406, %p407
      %p409 = scmp.le.s32.totalorder 1, %s25
      %p410 = scmp.lt.s32.totalorder %s25, 5
      %p411 = pnand %p409, %p410
      %p412 = pneg %p411
      // Predicated region
      $region9: #{tpu_custom_call.1} parent=5 // pred_check
        _
      $region10: #{tpu_custom_call.1} parent=5 // pred_check_branch
        %414 = sbr.rel (%p411) target = $region12
      $region11: #{tpu_custom_call.1} parent=5 // pred_region
        %s415 = ssub.s32 %s25, 1
      $region12: #{tpu_custom_call.1} parent=5 // pred_fallthru
        _
      %p416 = scmp.lt.s32.totalorder %s25, 4
      // Predicated region
      $region13: #{tpu_custom_call.1} parent=5 // pred_check
        %p417 = pneg %p416
      $region14: #{tpu_custom_call.1} parent=5 // pred_check_branch
        %419 = sbr.rel (%p417) target = $region16
      $region15: #{tpu_custom_call.1} parent=5 // pred_region
        // Predicated region
        $region17: #{tpu_custom_call.1} parent=15 // pred_check
          %p420 = pneg %p57
        $region18: #{tpu_custom_call.1} parent=15 // pred_check_branch
          %422 = sbr.rel (%p420) target = $region20
        $region19: #{tpu_custom_call.1} parent=15 // pred_region
          %s423 = sand.u32 %s47, 1
          %s424 = scalar_lea.sflag [#allocation5], %s423
          %s425 = sand.u32 %s47, 1
          %s426 = smul.addr %s425, 8
          %s427 = scalar_lea.vmem [#allocation4], %s426
          %s429 = ssub.s32 128, 128
          %430 = vsyncadd %s424, %s429
          %s431 = smul.addr %s32, 128
          %s432 = scalar_lea.hbm %s0, %s431
          %s434 = sshll.u32 %s427, 4
          %s435 = int_to_ptr.vmem [resolvable:$true] %s434
          %437 = dma.hbm_to_vmem [thread:$0]  %s432, 128, %s435, %s424
        $region20: #{tpu_custom_call.1} parent=15 // pred_fallthru
          _
        // Predicated region
        $region21: #{tpu_custom_call.1} parent=15 // pred_check
          %p438 = pneg %p83
        $region22: #{tpu_custom_call.1} parent=15 // pred_check_branch
          %440 = sbr.rel (%p438) target = $region24
        $region23: #{tpu_custom_call.1} parent=15 // pred_region
          %p441 = scmp.lt.s32.totalorder %s33, 1
          %s442 = scalar_select %p441, %s33, 1
          %s443 = smul.addr %s442, 4
          %s444 = smul.addr %s443, 4
          %s445 = scalar_lea.vmem %s1, %s444
        $region24: #{tpu_custom_call.1} parent=15 // pred_fallthru
          _
        // Predicated region
        $region25: #{tpu_custom_call.1} parent=15 // pred_check
          %p446 = pneg %p109
        $region26: #{tpu_custom_call.1} parent=15 // pred_check_branch
          %448 = sbr.rel (%p446) target = $region28
        $region27: #{tpu_custom_call.1} parent=15 // pred_region
          %p449 = scmp.lt.s32.totalorder %s33, 1
          %s450 = scalar_select %p449, %s33, 1
          %s451 = scalar_lea.vmem %s2, %s450
        $region28: #{tpu_custom_call.1} parent=15 // pred_fallthru
          _
        // Predicated region
        $region29: #{tpu_custom_call.1} parent=15 // pred_check
          %p452 = pneg %p135
        $region30: #{tpu_custom_call.1} parent=15 // pred_check_branch
          %454 = sbr.rel (%p452) target = $region32
        $region31: #{tpu_custom_call.1} parent=15 // pred_region
          %p455 = scmp.lt.s32.totalorder %s33, 1
          %s456 = scalar_select %p455, %s33, 1
          %s457 = smul.addr %s456, 4
          %s458 = smul.addr %s457, 4
          %s459 = scalar_lea.vmem %s3, %s458
        $region32: #{tpu_custom_call.1} parent=15 // pred_fallthru
          _
        // Predicated region
        $region33: #{tpu_custom_call.1} parent=15 // pred_check
          %p460 = pneg %p161
        $region34: #{tpu_custom_call.1} parent=15 // pred_check_branch
          %462 = sbr.rel (%p460) target = $region36
        $region35: #{tpu_custom_call.1} parent=15 // pred_region
          %p463 = scmp.lt.s32.totalorder %s33, 1
          %s464 = scalar_select %p463, %s33, 1
          %s465 = scalar_lea.vmem %s4, %s464
        $region36: #{tpu_custom_call.1} parent=15 // pred_fallthru
          _
        // Predicated region
        $region37: #{tpu_custom_call.1} parent=15 // pred_check
          %p466 = pneg %p187
        $region38: #{tpu_custom_call.1} parent=15 // pred_check_branch
          %468 = sbr.rel (%p466) target = $region40
        $region39: #{tpu_custom_call.1} parent=15 // pred_region
          %p469 = scmp.lt.s32.totalorder %s33, 1
          %s470 = scalar_select %p469, %s33, 1
          %s471 = scalar_lea.vmem %s5, %s470
        $region40: #{tpu_custom_call.1} parent=15 // pred_fallthru
          _
        // Predicated region
        $region41: #{tpu_custom_call.1} parent=15 // pred_check
          %p472 = pneg %p213
        $region42: #{tpu_custom_call.1} parent=15 // pred_check_branch
          %474 = sbr.rel (%p472) target = $region44
        $region43: #{tpu_custom_call.1} parent=15 // pred_region
          %p475 = scmp.lt.s32.totalorder %s33, 1
          %s476 = scalar_select %p475, %s33, 1
          %s477 = scalar_lea.vmem %s6, %s476
        $region44: #{tpu_custom_call.1} parent=15 // pred_fallthru
          _
        // Predicated region
        $region45: #{tpu_custom_call.1} parent=15 // pred_check
          %p478 = pneg %p239
        $region46: #{tpu_custom_call.1} parent=15 // pred_check_branch
          %480 = sbr.rel (%p478) target = $region48
        $region47: #{tpu_custom_call.1} parent=15 // pred_region
          %p481 = scmp.lt.s32.totalorder %s33, 1
          %s482 = scalar_select %p481, %s33, 1
          %s483 = smul.addr %s482, 4
          %s484 = smul.addr %s483, 4
          %s485 = scalar_lea.vmem %s7, %s484
        $region48: #{tpu_custom_call.1} parent=15 // pred_fallthru
          _
        // Predicated region
        $region49: #{tpu_custom_call.1} parent=15 // pred_check
          %p486 = pneg %p265
        $region50: #{tpu_custom_call.1} parent=15 // pred_check_branch
          %488 = sbr.rel (%p486) target = $region52
        $region51: #{tpu_custom_call.1} parent=15 // pred_region
          %p489 = scmp.lt.s32.totalorder %s33, 1
          %s490 = scalar_select %p489, %s33, 1
          %s491 = scalar_lea.vmem %s8, %s490
        $region52: #{tpu_custom_call.1} parent=15 // pred_fallthru
          _
        // Predicated region
        $region53: #{tpu_custom_call.1} parent=15 // pred_check
          %p492 = pneg %p291
        $region54: #{tpu_custom_call.1} parent=15 // pred_check_branch
          %494 = sbr.rel (%p492) target = $region56
        $region55: #{tpu_custom_call.1} parent=15 // pred_region
          %p495 = scmp.lt.s32.totalorder %s33, 1
          %s496 = scalar_select %p495, %s33, 1
          %s497 = smul.addr %s496, 8
          %s498 = smul.addr %s497, 4
          %s499 = scalar_lea.vmem %s9, %s498
        $region56: #{tpu_custom_call.1} parent=15 // pred_fallthru
          _
        // Predicated region
        $region57: #{tpu_custom_call.1} parent=15 // pred_check
          %p500 = pneg %p317
        $region58: #{tpu_custom_call.1} parent=15 // pred_check_branch
          %502 = sbr.rel (%p500) target = $region60
        $region59: #{tpu_custom_call.1} parent=15 // pred_region
          %p503 = scmp.lt.s32.totalorder %s33, 1
          %s504 = scalar_select %p503, %s33, 1
          %s505 = scalar_lea.vmem %s10, %s504
        $region60: #{tpu_custom_call.1} parent=15 // pred_fallthru
          _
        // Predicated region
        $region61: #{tpu_custom_call.1} parent=15 // pred_check
          %p506 = pneg %p343
        $region62: #{tpu_custom_call.1} parent=15 // pred_check_branch
          %508 = sbr.rel (%p506) target = $region64
        $region63: #{tpu_custom_call.1} parent=15 // pred_region
          %p509 = scmp.lt.s32.totalorder %s33, 1
          %s510 = scalar_select %p509, %s33, 1
          %s511 = scalar_lea.vmem %s11, %s510
        $region64: #{tpu_custom_call.1} parent=15 // pred_fallthru
          _
        // Predicated region
        $region65: #{tpu_custom_call.1} parent=15 // pred_check
          %p512 = pneg %p369
        $region66: #{tpu_custom_call.1} parent=15 // pred_check_branch
          %514 = sbr.rel (%p512) target = $region68
        $region67: #{tpu_custom_call.1} parent=15 // pred_region
          %p515 = scmp.lt.s32.totalorder %s33, 1
          %s516 = scalar_select %p515, %s33, 1
          %s517 = scalar_lea.vmem %s12, %s516
        $region68: #{tpu_custom_call.1} parent=15 // pred_fallthru
          _
      $region16: #{tpu_custom_call.1} parent=5 // pred_fallthru
        _
      %p518 = scmp.le.s32.totalorder 1, %s25
      %p519 = scmp.lt.s32.totalorder %s25, 5
      %p520 = pnand %p518, %p519
      %p521 = pneg %p520
      // Predicated region
      $region69: #{tpu_custom_call.1} parent=5 // pred_check
        _
      $region70: #{tpu_custom_call.1} parent=5 // pred_check_branch
        %523 = sbr.rel (%p520) target = $region72
      $region71: #{tpu_custom_call.1} parent=5 // pred_region
        %s524 = ssub.s32 %s25, 1
        %s525 = sand.u32 %s50, 1
        %s526 = scalar_lea.sflag [#allocation5], %s525
        %s527 = sand.u32 %s50, 1
        %s528 = smul.addr %s527, 8
        %s529 = scalar_lea.vmem [#allocation4], %s528
        // Predicated region
        $region73: #{tpu_custom_call.1} parent=71 // pred_check
          %p530 = pneg %p63
        $region74: #{tpu_custom_call.1} parent=71 // pred_check_branch
          %532 = sbr.rel (%p530) target = $region76
        $region75: #{tpu_custom_call.1} parent=71 // pred_region
          %533 = dma.done %s526, 128
        $region76: #{tpu_custom_call.1} parent=71 // pred_fallthru
          _
        %s534 = sand.u32 %s50, 1
        %s535 = scalar_lea.sflag [#allocation5], %s534
        %s536 = sand.u32 %s50, 1
        %s537 = smul.addr %s536, 8
        %s538 = scalar_lea.vmem [#allocation4], %s537
        %p539 = pneg %p63
        %p540 = pneg %p60
        %p541 = scmp.lt.s32.totalorder %s35, 1
        %s542 = scalar_select %p541, %s35, 1
        %s543 = smul.addr %s542, 4
        %s544 = smul.addr %s543, 4
        %s545 = scalar_lea.vmem %s1, %s544
        %p546 = pneg %p89
        %p547 = pneg %p86
        %p548 = scmp.lt.s32.totalorder %s35, 1
        %s549 = scalar_select %p548, %s35, 1
        %s550 = scalar_lea.vmem %s2, %s549
        %p551 = pneg %p115
        %p552 = pneg %p112
        %p553 = scmp.lt.s32.totalorder %s35, 1
        %s554 = scalar_select %p553, %s35, 1
        %s555 = smul.addr %s554, 4
        %s556 = smul.addr %s555, 4
        %s557 = scalar_lea.vmem %s3, %s556
        %p558 = pneg %p141
        %p559 = pneg %p138
        %p560 = scmp.lt.s32.totalorder %s35, 1
        %s561 = scalar_select %p560, %s35, 1
        %s562 = scalar_lea.vmem %s4, %s561
        %p563 = pneg %p167
        %p564 = pneg %p164
        %p565 = scmp.lt.s32.totalorder %s35, 1
        %s566 = scalar_select %p565, %s35, 1
        %s567 = scalar_lea.vmem %s5, %s566
        %p568 = pneg %p193
        %p569 = pneg %p190
        %p570 = scmp.lt.s32.totalorder %s35, 1
        %s571 = scalar_select %p570, %s35, 1
        %s572 = scalar_lea.vmem %s6, %s571
        %p573 = pneg %p219
        %p574 = pneg %p216
        %p575 = scmp.lt.s32.totalorder %s35, 1
        %s576 = scalar_select %p575, %s35, 1
        %s577 = smul.addr %s576, 4
        %s578 = smul.addr %s577, 4
        %s579 = scalar_lea.vmem %s7, %s578
        %p580 = pneg %p245
        %p581 = pneg %p242
        %p582 = scmp.lt.s32.totalorder %s35, 1
        %s583 = scalar_select %p582, %s35, 1
        %s584 = scalar_lea.vmem %s8, %s583
        %p585 = pneg %p271
        %p586 = pneg %p268
        %p587 = scmp.lt.s32.totalorder %s35, 1
        %s588 = scalar_select %p587, %s35, 1
        %s589 = smul.addr %s588, 8
        %s590 = smul.addr %s589, 4
        %s591 = scalar_lea.vmem %s9, %s590
        %p592 = pneg %p297
        %p593 = pneg %p294
        %p594 = scmp.lt.s32.totalorder %s35, 1
        %s595 = scalar_select %p594, %s35, 1
        %s596 = scalar_lea.vmem %s10, %s595
        %p597 = pneg %p323
        %p598 = pneg %p320
        %p599 = scmp.lt.s32.totalorder %s35, 1
        %s600 = scalar_select %p599, %s35, 1
        %s601 = scalar_lea.vmem %s11, %s600
        %p602 = pneg %p349
        %p603 = pneg %p346
        %p604 = scmp.lt.s32.totalorder %s35, 1
        %s605 = scalar_select %p604, %s35, 1
        %s606 = scalar_lea.vmem %s12, %s605
        %p607 = pneg %p375
        %p608 = pneg %p372
        %p609 = pneg %p401
        %p610 = pneg %p398
        %s611 = sand.u32 %s388, 1
        %s612 = scalar_lea.sflag [#allocation6], %s611
        %s613 = sand.u32 %s388, 1
        %s614 = smul.addr %s613, 8
        %s615 = scalar_lea.vmem [#allocation7], %s614
        %p616 = scmp.lt.s32.totalorder %s35, 1
        %s617 = scalar_select %p616, %s35, 1
        %s618 = smul.addr %s617, 4
        %s619 = smul.addr %s618, 4
        %s620 = scalar_lea.vmem %s1, %s619
        %p621 = scmp.lt.s32.totalorder %s35, 1
        %s622 = scalar_select %p621, %s35, 1
        %s623 = scalar_lea.vmem %s2, %s622
        %p624 = scmp.lt.s32.totalorder %s35, 1
        %s625 = scalar_select %p624, %s35, 1
        %s626 = smul.addr %s625, 4
        %s627 = smul.addr %s626, 4
        %s628 = scalar_lea.vmem %s3, %s627
        %p629 = scmp.lt.s32.totalorder %s35, 1
        %s630 = scalar_select %p629, %s35, 1
        %s631 = scalar_lea.vmem %s4, %s630
        %p632 = scmp.lt.s32.totalorder %s35, 1
        %s633 = scalar_select %p632, %s35, 1
        %s634 = scalar_lea.vmem %s5, %s633
        %p635 = scmp.lt.s32.totalorder %s35, 1
        %s636 = scalar_select %p635, %s35, 1
        %s637 = scalar_lea.vmem %s6, %s636
        %p638 = scmp.lt.s32.totalorder %s35, 1
        %s639 = scalar_select %p638, %s35, 1
        %s640 = smul.addr %s639, 4
        %s641 = smul.addr %s640, 4
        %s642 = scalar_lea.vmem %s7, %s641
        %p643 = scmp.lt.s32.totalorder %s35, 1
        %s644 = scalar_select %p643, %s35, 1
        %s645 = scalar_lea.vmem %s8, %s644
        %p646 = scmp.lt.s32.totalorder %s35, 1
        %s647 = scalar_select %p646, %s35, 1
        %s648 = smul.addr %s647, 8
        %s649 = smul.addr %s648, 4
        %s650 = scalar_lea.vmem %s9, %s649
        %p651 = scmp.lt.s32.totalorder %s35, 1
        %s652 = scalar_select %p651, %s35, 1
        %s653 = scalar_lea.vmem %s10, %s652
        %p654 = scmp.lt.s32.totalorder %s35, 1
        %s655 = scalar_select %p654, %s35, 1
        %s656 = scalar_lea.vmem %s11, %s655
        %p657 = scmp.lt.s32.totalorder %s35, 1
        %s658 = scalar_select %p657, %s35, 1
        %s659 = scalar_lea.vmem %s12, %s658
        %p661 = scmp.eq.s32.totalorder %s35, 0
        // Predicated region
        $region77: #{tpu_custom_call.1} parent=71 // pred_check
          %p662 = pneg %p661
        $region78: #{tpu_custom_call.1} parent=71 // pred_check_branch
          %664 = sbr.rel (%p662) target = $region80
        $region79: #{tpu_custom_call.1} parent=71 // pred_region
          %v665 = vld [vmem:[%s529] sm:$0xff]
          %vm666 = vcmask 261120
          %667 = vst.msk [vmem:[#allocation2] sm:$0xff] %vm666, %v665
        $region80: #{tpu_custom_call.1} parent=71 // pred_fallthru
          _
        %v668 = vld [vmem:[#allocation2] sm:$0xff]
        %v669 = vpack.c.bf16 %v668, %v668
        %v670 = vld [vmem:[%s620] sm:$0xf]
        %v671 = vld [vmem:[%s620 + $0x4] sm:$0xf]
        %v672 = vld [vmem:[%s620 + $0x8] sm:$0xf]
        %v673 = vld [vmem:[%s620 + $0xc] sm:$0xf]
        %v674 = vld [vmem:[%s623] sm:$0x1]
        %v676 = vlaneseq
        %v677 = vshrl.u32 %v676, 7
        %v678 = vsub.s32 0, %v677
        %v679 = vrot.slane %v674, %v678
        %v685 = vunpack.c.l.b16 %v670
        %v686 = vunpack.c.l.b16 %v671
        %v687 = vunpack.c.l.b16 %v672
        %v688 = vunpack.c.l.b16 %v673
        %v689 = vpack.c.b16 %v686, %v685
        %v690 = vpack.c.b16 %v688, %v687
        %vm693 = vcmask 261120
        %v695 = vsel %vm693, %v669, 0
        %697 = vmatprep.subr.bf16.mxu0 0
        %698 = vmatpush1.bf16.msra.mxu0 0
        %699 = vmatprep.subr.bf16.mxu0 0
        %700 = vmatpush1.bf16.msra.mxu0 0
        %701 = vmatprep.subr.bf16.mxu0 0
        %702 = vmatpush1.bf16.msra.mxu0 0
        %703 = vmatprep.subr.bf16.mxu0 0
        %704 = vmatpush1.bf16.msra.mxu0 0
        %705 = vmatprep.subr.bf16.mxu0 0
        %706 = vmatpush1.bf16.msra.mxu0 0
        %707 = vmatprep.subr.bf16.mxu0 0
        %708 = vmatpush1.bf16.msra.mxu0 0
        %709 = vmatprep.subr.bf16.mxu0 0
        %710 = vmatpush1.bf16.msra.mxu0 %v690
        %711 = vmatprep.subr.bf16.mxu0 0
        %712 = vmatpush1.bf16.msra.mxu0 %v689
        %713 = vmatprep.subr.bf16.mxu0 0
        %714 = vmatpush2.bf16.msra.mxu0 0
        %715 = vmatprep.subr.bf16.mxu0 0
        %716 = vmatpush2.bf16.msra.mxu0 0
        %717 = vmatprep.subr.bf16.mxu0 0
        %718 = vmatpush2.bf16.msra.mxu0 0
        %719 = vmatprep.subr.bf16.mxu0 0
        %720 = vmatpush2.bf16.msra.mxu0 0
        %721 = vmatprep.subr.bf16.mxu0 0
        %722 = vmatpush2.bf16.msra.mxu0 0
        %723 = vmatprep.subr.bf16.mxu0 0
        %724 = vmatpush2.bf16.msra.mxu0 0
        %725 = vmatprep.subr.bf16.mxu0 0
        %726 = vmatpush2.bf16.msra.mxu0 0
        %727 = vmatprep.subr.bf16.mxu0 0
        %728 = vmatpush2.bf16.msra.mxu0 0
        %729 = vmatprep.mubr.bf16.mxu0 0
        %730 = vmatmul.mubr.bf16.gmra.mxu0 %v695
        %v731 = vpop.f32.mrf.mxu0
        %v732 = vadd.f32 %v679, %v731
        %v733 = vpop.f32.mrf.mxu0
        %v734 = vpop.f32.mrf.mxu0
        %v735 = vpop.f32.mrf.mxu0
        %736 = vdwg.mxu0
        %v737 = vpack.c.bf16 %v732, %v732
        %739 = vrot.lane.b32.xlu0 %v737, 96
        %v740 = vpop.permute.xlu0 %739
        %vm741 = vcmask 64512
        %v743 = vsel %vm741, %v737, 0
        %v746 = vsel %vm741, %v740, 0
        %748 = vmatprep.subr.bf16.mxu0 0
        %749 = vmatpush1.bf16.xpose.msra.mxu0 0
        %750 = vmatprep.subr.bf16.mxu0 0
        %751 = vmatpush1.bf16.xpose.msra.mxu0 0
        %752 = vmatprep.subr.bf16.mxu0 0
        %753 = vmatpush1.bf16.xpose.msra.mxu0 0
        %754 = vmatprep.subr.bf16.mxu0 0
        %755 = vmatpush1.bf16.xpose.msra.mxu0 0
        %756 = vmatprep.subr.bf16.mxu0 0
        %757 = vmatpush1.bf16.xpose.msra.mxu0 0
        %758 = vmatprep.subr.bf16.mxu0 0
        %759 = vmatpush1.bf16.xpose.msra.mxu0 0
        %760 = vmatprep.subr.bf16.mxu0 0
        %761 = vmatpush1.bf16.xpose.msra.mxu0 0
        %762 = vmatprep.subr.bf16.mxu0 0
        %763 = vmatpush1.bf16.xpose.msra.mxu0 %v746
        %764 = vmatprep.subr.bf16.mxu0 0
        %765 = vmatpush2.bf16.xpose.msra.mxu0 0
        %766 = vmatprep.subr.bf16.mxu0 0
        %767 = vmatpush2.bf16.xpose.msra.mxu0 0
        %768 = vmatprep.subr.bf16.mxu0 0
        %769 = vmatpush2.bf16.xpose.msra.mxu0 0
        %770 = vmatprep.subr.bf16.mxu0 0
        %771 = vmatpush2.bf16.xpose.msra.mxu0 0
        %772 = vmatprep.subr.bf16.mxu0 0
        %773 = vmatpush2.bf16.xpose.msra.mxu0 0
        %774 = vmatprep.subr.bf16.mxu0 0
        %775 = vmatpush2.bf16.xpose.msra.mxu0 0
        %776 = vmatprep.subr.bf16.mxu0 0
        %777 = vmatpush2.bf16.xpose.msra.mxu0 0
        %778 = vmatprep.subr.bf16.mxu0 0
        %779 = vmatpush2.bf16.xpose.msra.mxu0 0
        %780 = vmatprep.mubr.bf16.mxu0 0
        %781 = vmatmul.mubr.bf16.gmra.mxu0 %v743
        %v782 = vpop.f32.mrf.mxu0
        %v783 = vadd.f32 0.0, %v782
        %v784 = vpop.f32.mrf.mxu0
        %v785 = vpop.f32.mrf.mxu0
        %v786 = vpop.f32.mrf.mxu0
        %787 = vdwg.mxu0
        %v788 = vsel %vm741, %v783, -inf
        %789 = vmax.xlane.f32.xlu0 %v788
        %v790 = vpop.xlane.xlu0 %789
        %v791 = vsub.f32 %v783, %v790
        %v792 = vmul.f32 %v791, 1.442695
        %v793 = vpow.pop %v792
        %v794 = vsel %vm741, %v793, 0.0
        %795 = vadd.xlane.f32.xlu0 %v794
        %v796 = vpop.xlane.xlu0 %795
        %v797 = vrcp.pop %v796
        %v798 = vmul.f32 1.0, %v797
        %v799 = vpack.c.bf16 %v793, %v793
        %800 = vrot.lane.b32.xlu0 %v737, 64
        %v801 = vpop.permute.xlu0 %800
        %v803 = vsel %vm741, %v799, 0
        %vm805 = vcmask 1043456
        %v807 = vsel %vm805, %v801, 0
        %809 = vmatprep.subr.bf16.mxu0 0
        %810 = vmatpush1.bf16.msra.mxu0 0
        %811 = vmatprep.subr.bf16.mxu0 0
        %812 = vmatpush1.bf16.msra.mxu0 0
        %813 = vmatprep.subr.bf16.mxu0 0
        %814 = vmatpush1.bf16.msra.mxu0 0
        %815 = vmatprep.subr.bf16.mxu0 0
        %816 = vmatpush1.bf16.msra.mxu0 0
        %817 = vmatprep.subr.bf16.mxu0 0
        %818 = vmatpush1.bf16.msra.mxu0 0
        %819 = vmatprep.subr.bf16.mxu0 0
        %820 = vmatpush1.bf16.msra.mxu0 0
        %821 = vmatprep.subr.bf16.mxu0 0
        %822 = vmatpush1.bf16.msra.mxu0 0
        %823 = vmatprep.subr.bf16.mxu0 0
        %824 = vmatpush1.bf16.msra.mxu0 %v807
        %825 = vmatprep.subr.bf16.mxu0 0
        %826 = vmatpush2.bf16.msra.mxu0 0
        %827 = vmatprep.subr.bf16.mxu0 0
        %828 = vmatpush2.bf16.msra.mxu0 0
        %829 = vmatprep.subr.bf16.mxu0 0
        %830 = vmatpush2.bf16.msra.mxu0 0
        %831 = vmatprep.subr.bf16.mxu0 0
        %832 = vmatpush2.bf16.msra.mxu0 0
        %833 = vmatprep.subr.bf16.mxu0 0
        %834 = vmatpush2.bf16.msra.mxu0 0
        %835 = vmatprep.subr.bf16.mxu0 0
        %836 = vmatpush2.bf16.msra.mxu0 0
        %837 = vmatprep.subr.bf16.mxu0 0
        %838 = vmatpush2.bf16.msra.mxu0 0
        %839 = vmatprep.subr.bf16.mxu0 0
        %840 = vmatpush2.bf16.msra.mxu0 0
        %841 = vmatprep.mubr.bf16.mxu0 0
        %842 = vmatmul.mubr.bf16.gmra.mxu0 %v803
        %v843 = vpop.f32.mrf.mxu0
        %v844 = vadd.f32 0.0, %v843
        %v845 = vpop.f32.mrf.mxu0
        %v846 = vpop.f32.mrf.mxu0
        %v847 = vpop.f32.mrf.mxu0
        %848 = vdwg.mxu0
        %v849 = vmul.f32 %v844, %v798
        %v850 = vpack.c.bf16 %v849, %v849
        %851 = vrot.lane.b32.xlu0 %v737, 120
        %v852 = vpop.permute.xlu0 %851
        %853 = vrot.lane.b32.xlu0 %v737, 88
        %v854 = vpop.permute.xlu0 %853
        %v856 = vsel %vm741, %v852, 0
        %v859 = vsel %vm741, %v854, 0
        %861 = vmatprep.subr.bf16.mxu0 0
        %862 = vmatpush1.bf16.xpose.msra.mxu0 0
        %863 = vmatprep.subr.bf16.mxu0 0
        %864 = vmatpush1.bf16.xpose.msra.mxu0 0
        %865 = vmatprep.subr.bf16.mxu0 0
        %866 = vmatpush1.bf16.xpose.msra.mxu0 0
        %867 = vmatprep.subr.bf16.mxu0 0
        %868 = vmatpush1.bf16.xpose.msra.mxu0 0
        %869 = vmatprep.subr.bf16.mxu0 0
        %870 = vmatpush1.bf16.xpose.msra.mxu0 0
        %871 = vmatprep.subr.bf16.mxu0 0
        %872 = vmatpush1.bf16.xpose.msra.mxu0 0
        %873 = vmatprep.subr.bf16.mxu0 0
        %874 = vmatpush1.bf16.xpose.msra.mxu0 0
        %875 = vmatprep.subr.bf16.mxu0 0
        %876 = vmatpush1.bf16.xpose.msra.mxu0 %v859
        %877 = vmatprep.subr.bf16.mxu0 0
        %878 = vmatpush2.bf16.xpose.msra.mxu0 0
        %879 = vmatprep.subr.bf16.mxu0 0
        %880 = vmatpush2.bf16.xpose.msra.mxu0 0
        %881 = vmatprep.subr.bf16.mxu0 0
        %882 = vmatpush2.bf16.xpose.msra.mxu0 0
        %883 = vmatprep.subr.bf16.mxu0 0
        %884 = vmatpush2.bf16.xpose.msra.mxu0 0
        %885 = vmatprep.subr.bf16.mxu0 0
        %886 = vmatpush2.bf16.xpose.msra.mxu0 0
        %887 = vmatprep.subr.bf16.mxu0 0
        %888 = vmatpush2.bf16.xpose.msra.mxu0 0
        %889 = vmatprep.subr.bf16.mxu0 0
        %890 = vmatpush2.bf16.xpose.msra.mxu0 0
        %891 = vmatprep.subr.bf16.mxu0 0
        %892 = vmatpush2.bf16.xpose.msra.mxu0 0
        %893 = vmatprep.mubr.bf16.mxu0 0
        %894 = vmatmul.mubr.bf16.gmra.mxu0 %v856
        %v895 = vpop.f32.mrf.mxu0
        %v896 = vadd.f32 0.0, %v895
        %v897 = vpop.f32.mrf.mxu0
        %v898 = vpop.f32.mrf.mxu0
        %v899 = vpop.f32.mrf.mxu0
        %900 = vdwg.mxu0
        %v901 = vsel %vm741, %v896, -inf
        %902 = vmax.xlane.f32.xlu0 %v901
        %v903 = vpop.xlane.xlu0 %902
        %v904 = vsub.f32 %v896, %v903
        %v905 = vmul.f32 %v904, 1.442695
        %v906 = vpow.pop %v905
        %v907 = vsel %vm741, %v906, 0.0
        %908 = vadd.xlane.f32.xlu0 %v907
        %v909 = vpop.xlane.xlu0 %908
        %v910 = vrcp.pop %v909
        %v911 = vmul.f32 1.0, %v910
        %v912 = vpack.c.bf16 %v906, %v906
        %913 = vrot.lane.b32.xlu0 %v737, 56
        %v914 = vpop.permute.xlu0 %913
        %v916 = vsel %vm741, %v912, 0
        %v919 = vsel %vm805, %v914, 0
        %921 = vmatprep.subr.bf16.mxu0 0
        %922 = vmatpush1.bf16.msra.mxu0 0
        %923 = vmatprep.subr.bf16.mxu0 0
        %924 = vmatpush1.bf16.msra.mxu0 0
        %925 = vmatprep.subr.bf16.mxu0 0
        %926 = vmatpush1.bf16.msra.mxu0 0
        %927 = vmatprep.subr.bf16.mxu0 0
        %928 = vmatpush1.bf16.msra.mxu0 0
        %929 = vmatprep.subr.bf16.mxu0 0
        %930 = vmatpush1.bf16.msra.mxu0 0
        %931 = vmatprep.subr.bf16.mxu0 0
        %932 = vmatpush1.bf16.msra.mxu0 0
        %933 = vmatprep.subr.bf16.mxu0 0
        %934 = vmatpush1.bf16.msra.mxu0 0
        %935 = vmatprep.subr.bf16.mxu0 0
        %936 = vmatpush1.bf16.msra.mxu0 %v919
        %937 = vmatprep.subr.bf16.mxu0 0
        %938 = vmatpush2.bf16.msra.mxu0 0
        %939 = vmatprep.subr.bf16.mxu0 0
        %940 = vmatpush2.bf16.msra.mxu0 0
        %941 = vmatprep.subr.bf16.mxu0 0
        %942 = vmatpush2.bf16.msra.mxu0 0
        %943 = vmatprep.subr.bf16.mxu0 0
        %944 = vmatpush2.bf16.msra.mxu0 0
        %945 = vmatprep.subr.bf16.mxu0 0
        %946 = vmatpush2.bf16.msra.mxu0 0
        %947 = vmatprep.subr.bf16.mxu0 0
        %948 = vmatpush2.bf16.msra.mxu0 0
        %949 = vmatprep.subr.bf16.mxu0 0
        %950 = vmatpush2.bf16.msra.mxu0 0
        %951 = vmatprep.subr.bf16.mxu0 0
        %952 = vmatpush2.bf16.msra.mxu0 0
        %953 = vmatprep.mubr.bf16.mxu0 0
        %954 = vmatmul.mubr.bf16.gmra.mxu0 %v916
        %v955 = vpop.f32.mrf.mxu0
        %v956 = vadd.f32 0.0, %v955
        %v957 = vpop.f32.mrf.mxu0
        %v958 = vpop.f32.mrf.mxu0
        %v959 = vpop.f32.mrf.mxu0
        %960 = vdwg.mxu0
        %v961 = vmul.f32 %v956, %v911
        %v962 = vpack.c.bf16 %v961, %v961
        %964 = vrot.lane.b32.xlu0 %v962, 8
        %v965 = vpop.permute.xlu0 %964
        %v968 = vsel %vm741, %v850, %v965
        %vm970 = vcmask 125952
        %971 = vst.msk [vmem:[#allocation3] sm:$0xf] %vm970, %v968
        %972 = vrot.lane.b32.xlu0 %v737, 112
        %v973 = vpop.permute.xlu0 %972
        %974 = vrot.lane.b32.xlu0 %v737, 80
        %v975 = vpop.permute.xlu0 %974
        %v977 = vsel %vm741, %v973, 0
        %v980 = vsel %vm741, %v975, 0
        %982 = vmatprep.subr.bf16.mxu0 0
        %983 = vmatpush1.bf16.xpose.msra.mxu0 0
        %984 = vmatprep.subr.bf16.mxu0 0
        %985 = vmatpush1.bf16.xpose.msra.mxu0 0
        %986 = vmatprep.subr.bf16.mxu0 0
        %987 = vmatpush1.bf16.xpose.msra.mxu0 0
        %988 = vmatprep.subr.bf16.mxu0 0
        %989 = vmatpush1.bf16.xpose.msra.mxu0 0
        %990 = vmatprep.subr.bf16.mxu0 0
        %991 = vmatpush1.bf16.xpose.msra.mxu0 0
        %992 = vmatprep.subr.bf16.mxu0 0
        %993 = vmatpush1.bf16.xpose.msra.mxu0 0
        %994 = vmatprep.subr.bf16.mxu0 0
        %995 = vmatpush1.bf16.xpose.msra.mxu0 0
        %996 = vmatprep.subr.bf16.mxu0 0
        %997 = vmatpush1.bf16.xpose.msra.mxu0 %v980
        %998 = vmatprep.subr.bf16.mxu0 0
        %999 = vmatpush2.bf16.xpose.msra.mxu0 0
        %1000 = vmatprep.subr.bf16.mxu0 0
        %1001 = vmatpush2.bf16.xpose.msra.mxu0 0
        %1002 = vmatprep.subr.bf16.mxu0 0
        %1003 = vmatpush2.bf16.xpose.msra.mxu0 0
        %1004 = vmatprep.subr.bf16.mxu0 0
        %1005 = vmatpush2.bf16.xpose.msra.mxu0 0
        %1006 = vmatprep.subr.bf16.mxu0 0
        %1007 = vmatpush2.bf16.xpose.msra.mxu0 0
        %1008 = vmatprep.subr.bf16.mxu0 0
        %1009 = vmatpush2.bf16.xpose.msra.mxu0 0
        %1010 = vmatprep.subr.bf16.mxu0 0
        %1011 = vmatpush2.bf16.xpose.msra.mxu0 0
        %1012 = vmatprep.subr.bf16.mxu0 0
        %1013 = vmatpush2.bf16.xpose.msra.mxu0 0
        %1014 = vmatprep.mubr.bf16.mxu0 0
        %1015 = vmatmul.mubr.bf16.gmra.mxu0 %v977
        %v1016 = vpop.f32.mrf.mxu0
        %v1017 = vadd.f32 0.0, %v1016
        %v1018 = vpop.f32.mrf.mxu0
        %v1019 = vpop.f32.mrf.mxu0
        %v1020 = vpop.f32.mrf.mxu0
        %1021 = vdwg.mxu0
        %v1022 = vsel %vm741, %v1017, -inf
        %1023 = vmax.xlane.f32.xlu0 %v1022
        %v1024 = vpop.xlane.xlu0 %1023
        %v1025 = vsub.f32 %v1017, %v1024
        %v1026 = vmul.f32 %v1025, 1.442695
        %v1027 = vpow.pop %v1026
        %v1028 = vsel %vm741, %v1027, 0.0
        %1029 = vadd.xlane.f32.xlu0 %v1028
        %v1030 = vpop.xlane.xlu0 %1029
        %v1031 = vrcp.pop %v1030
        %v1032 = vmul.f32 1.0, %v1031
        %v1033 = vpack.c.bf16 %v1027, %v1027
        %1034 = vrot.lane.b32.xlu0 %v737, 48
        %v1035 = vpop.permute.xlu0 %1034
        %v1037 = vsel %vm741, %v1033, 0
        %v1040 = vsel %vm805, %v1035, 0
        %1042 = vmatprep.subr.bf16.mxu0 0
        %1043 = vmatpush1.bf16.msra.mxu0 0
        %1044 = vmatprep.subr.bf16.mxu0 0
        %1045 = vmatpush1.bf16.msra.mxu0 0
        %1046 = vmatprep.subr.bf16.mxu0 0
        %1047 = vmatpush1.bf16.msra.mxu0 0
        %1048 = vmatprep.subr.bf16.mxu0 0
        %1049 = vmatpush1.bf16.msra.mxu0 0
        %1050 = vmatprep.subr.bf16.mxu0 0
        %1051 = vmatpush1.bf16.msra.mxu0 0
        %1052 = vmatprep.subr.bf16.mxu0 0
        %1053 = vmatpush1.bf16.msra.mxu0 0
        %1054 = vmatprep.subr.bf16.mxu0 0
        %1055 = vmatpush1.bf16.msra.mxu0 0
        %1056 = vmatprep.subr.bf16.mxu0 0
        %1057 = vmatpush1.bf16.msra.mxu0 %v1040
        %1058 = vmatprep.subr.bf16.mxu0 0
        %1059 = vmatpush2.bf16.msra.mxu0 0
        %1060 = vmatprep.subr.bf16.mxu0 0
        %1061 = vmatpush2.bf16.msra.mxu0 0
        %1062 = vmatprep.subr.bf16.mxu0 0
        %1063 = vmatpush2.bf16.msra.mxu0 0
        %1064 = vmatprep.subr.bf16.mxu0 0
        %1065 = vmatpush2.bf16.msra.mxu0 0
        %1066 = vmatprep.subr.bf16.mxu0 0
        %1067 = vmatpush2.bf16.msra.mxu0 0
        %1068 = vmatprep.subr.bf16.mxu0 0
        %1069 = vmatpush2.bf16.msra.mxu0 0
        %1070 = vmatprep.subr.bf16.mxu0 0
        %1071 = vmatpush2.bf16.msra.mxu0 0
        %1072 = vmatprep.subr.bf16.mxu0 0
        %1073 = vmatpush2.bf16.msra.mxu0 0
        %1074 = vmatprep.mubr.bf16.mxu0 0
        %1075 = vmatmul.mubr.bf16.gmra.mxu0 %v1037
        %v1076 = vpop.f32.mrf.mxu0
        %v1077 = vadd.f32 0.0, %v1076
        %v1078 = vpop.f32.mrf.mxu0
        %v1079 = vpop.f32.mrf.mxu0
        %v1080 = vpop.f32.mrf.mxu0
        %1081 = vdwg.mxu0
        %v1082 = vmul.f32 %v1077, %v1032
        %v1083 = vpack.c.bf16 %v1082, %v1082
        %1084 = vrot.lane.b32.xlu0 %v737, 104
        %v1085 = vpop.permute.xlu0 %1084
        %1086 = vrot.lane.b32.xlu0 %v737, 72
        %v1087 = vpop.permute.xlu0 %1086
        %v1089 = vsel %vm741, %v1085, 0
        %v1092 = vsel %vm741, %v1087, 0
        %1094 = vmatprep.subr.bf16.mxu0 0
        %1095 = vmatpush1.bf16.xpose.msra.mxu0 0
        %1096 = vmatprep.subr.bf16.mxu0 0
        %1097 = vmatpush1.bf16.xpose.msra.mxu0 0
        %1098 = vmatprep.subr.bf16.mxu0 0
        %1099 = vmatpush1.bf16.xpose.msra.mxu0 0
        %1100 = vmatprep.subr.bf16.mxu0 0
        %1101 = vmatpush1.bf16.xpose.msra.mxu0 0
        %1102 = vmatprep.subr.bf16.mxu0 0
        %1103 = vmatpush1.bf16.xpose.msra.mxu0 0
        %1104 = vmatprep.subr.bf16.mxu0 0
        %1105 = vmatpush1.bf16.xpose.msra.mxu0 0
        %1106 = vmatprep.subr.bf16.mxu0 0
        %1107 = vmatpush1.bf16.xpose.msra.mxu0 0
        %1108 = vmatprep.subr.bf16.mxu0 0
        %1109 = vmatpush1.bf16.xpose.msra.mxu0 %v1092
        %1110 = vmatprep.subr.bf16.mxu0 0
        %1111 = vmatpush2.bf16.xpose.msra.mxu0 0
        %1112 = vmatprep.subr.bf16.mxu0 0
        %1113 = vmatpush2.bf16.xpose.msra.mxu0 0
        %1114 = vmatprep.subr.bf16.mxu0 0
        %1115 = vmatpush2.bf16.xpose.msra.mxu0 0
        %1116 = vmatprep.subr.bf16.mxu0 0
        %1117 = vmatpush2.bf16.xpose.msra.mxu0 0
        %1118 = vmatprep.subr.bf16.mxu0 0
        %1119 = vmatpush2.bf16.xpose.msra.mxu0 0
        %1120 = vmatprep.subr.bf16.mxu0 0
        %1121 = vmatpush2.bf16.xpose.msra.mxu0 0
        %1122 = vmatprep.subr.bf16.mxu0 0
        %1123 = vmatpush2.bf16.xpose.msra.mxu0 0
        %1124 = vmatprep.subr.bf16.mxu0 0
        %1125 = vmatpush2.bf16.xpose.msra.mxu0 0
        %1126 = vmatprep.mubr.bf16.mxu0 0
        %1127 = vmatmul.mubr.bf16.gmra.mxu0 %v1089
        %v1128 = vpop.f32.mrf.mxu0
        %v1129 = vadd.f32 0.0, %v1128
        %v1130 = vpop.f32.mrf.mxu0
        %v1131 = vpop.f32.mrf.mxu0
        %v1132 = vpop.f32.mrf.mxu0
        %1133 = vdwg.mxu0
        %v1134 = vsel %vm741, %v1129, -inf
        %1135 = vmax.xlane.f32.xlu0 %v1134
        %v1136 = vpop.xlane.xlu0 %1135
        %v1137 = vsub.f32 %v1129, %v1136
        %v1138 = vmul.f32 %v1137, 1.442695
        %v1139 = vpow.pop %v1138
        %v1140 = vsel %vm741, %v1139, 0.0
        %1141 = vadd.xlane.f32.xlu0 %v1140
        %v1142 = vpop.xlane.xlu0 %1141
        %v1143 = vrcp.pop %v1142
        %v1144 = vmul.f32 1.0, %v1143
        %v1145 = vpack.c.bf16 %v1139, %v1139
        %1146 = vrot.lane.b32.xlu0 %v737, 40
        %v1147 = vpop.permute.xlu0 %1146
        %v1149 = vsel %vm741, %v1145, 0
        %v1152 = vsel %vm805, %v1147, 0
        %1154 = vmatprep.subr.bf16.mxu0 0
        %1155 = vmatpush1.bf16.msra.mxu0 0
        %1156 = vmatprep.subr.bf16.mxu0 0
        %1157 = vmatpush1.bf16.msra.mxu0 0
        %1158 = vmatprep.subr.bf16.mxu0 0
        %1159 = vmatpush1.bf16.msra.mxu0 0
        %1160 = vmatprep.subr.bf16.mxu0 0
        %1161 = vmatpush1.bf16.msra.mxu0 0
        %1162 = vmatprep.subr.bf16.mxu0 0
        %1163 = vmatpush1.bf16.msra.mxu0 0
        %1164 = vmatprep.subr.bf16.mxu0 0
        %1165 = vmatpush1.bf16.msra.mxu0 0
        %1166 = vmatprep.subr.bf16.mxu0 0
        %1167 = vmatpush1.bf16.msra.mxu0 0
        %1168 = vmatprep.subr.bf16.mxu0 0
        %1169 = vmatpush1.bf16.msra.mxu0 %v1152
        %1170 = vmatprep.subr.bf16.mxu0 0
        %1171 = vmatpush2.bf16.msra.mxu0 0
        %1172 = vmatprep.subr.bf16.mxu0 0
        %1173 = vmatpush2.bf16.msra.mxu0 0
        %1174 = vmatprep.subr.bf16.mxu0 0
        %1175 = vmatpush2.bf16.msra.mxu0 0
        %1176 = vmatprep.subr.bf16.mxu0 0
        %1177 = vmatpush2.bf16.msra.mxu0 0
        %1178 = vmatprep.subr.bf16.mxu0 0
        %1179 = vmatpush2.bf16.msra.mxu0 0
        %1180 = vmatprep.subr.bf16.mxu0 0
        %1181 = vmatpush2.bf16.msra.mxu0 0
        %1182 = vmatprep.subr.bf16.mxu0 0
        %1183 = vmatpush2.bf16.msra.mxu0 0
        %1184 = vmatprep.subr.bf16.mxu0 0
        %1185 = vmatpush2.bf16.msra.mxu0 0
        %1186 = vmatprep.mubr.bf16.mxu0 0
        %1187 = vmatmul.mubr.bf16.gmra.mxu0 %v1149
        %v1188 = vpop.f32.mrf.mxu0
        %v1189 = vadd.f32 0.0, %v1188
        %v1190 = vpop.f32.mrf.mxu0
        %v1191 = vpop.f32.mrf.mxu0
        %v1192 = vpop.f32.mrf.mxu0
        %1193 = vdwg.mxu0
        %v1194 = vmul.f32 %v1189, %v1144
        %v1195 = vpack.c.bf16 %v1194, %v1194
        %1197 = vrot.lane.b32.xlu0 %v1195, 8
        %v1198 = vpop.permute.xlu0 %1197
        %v1201 = vsel %vm741, %v1083, %v1198
        %v1203 = vunpack.c.l.b16 %v1201
        %v1204 = vpack.c.b16 %v1203, %v1203
        %1205 = vrot.lane.b32.xlu0 %v1204, 16
        %v1206 = vpop.permute.xlu0 %1205
        %vm1208 = vcmask 257152
        %1209 = vst.msk [vmem:[#allocation3] sm:$0xf] %vm1208, %v1206
        %v1210 = vld [vmem:[#allocation3] sm:$0xf]
        %v1211 = vld [vmem:[%s628] sm:$0xf]
        %v1212 = vld [vmem:[%s628 + $0x4] sm:$0xf]
        %v1213 = vld [vmem:[%s628 + $0x8] sm:$0xf]
        %v1214 = vld [vmem:[%s628 + $0xc] sm:$0xf]
        %v1215 = vld [vmem:[%s631] sm:$0x1]
        %v1217 = vlaneseq
        %v1218 = vshrl.u32 %v1217, 7
        %v1219 = vsub.s32 0, %v1218
        %v1220 = vrot.slane %v1215, %v1219
        %v1226 = vunpack.c.l.b16 %v1211
        %v1227 = vunpack.c.l.b16 %v1212
        %v1228 = vunpack.c.l.b16 %v1213
        %v1229 = vunpack.c.l.b16 %v1214
        %v1230 = vpack.c.b16 %v1227, %v1226
        %v1231 = vpack.c.b16 %v1229, %v1228
        %v1235 = vsel %vm693, %v1210, 0
        %1237 = vmatprep.subr.bf16.mxu0 0
        %1238 = vmatpush1.bf16.msra.mxu0 0
        %1239 = vmatprep.subr.bf16.mxu0 0
        %1240 = vmatpush1.bf16.msra.mxu0 0
        %1241 = vmatprep.subr.bf16.mxu0 0
        %1242 = vmatpush1.bf16.msra.mxu0 0
        %1243 = vmatprep.subr.bf16.mxu0 0
        %1244 = vmatpush1.bf16.msra.mxu0 0
        %1245 = vmatprep.subr.bf16.mxu0 0
        %1246 = vmatpush1.bf16.msra.mxu0 0
        %1247 = vmatprep.subr.bf16.mxu0 0
        %1248 = vmatpush1.bf16.msra.mxu0 0
        %1249 = vmatprep.subr.bf16.mxu0 0
        %1250 = vmatpush1.bf16.msra.mxu0 %v1231
        %1251 = vmatprep.subr.bf16.mxu0 0
        %1252 = vmatpush1.bf16.msra.mxu0 %v1230
        %1253 = vmatprep.subr.bf16.mxu0 0
        %1254 = vmatpush2.bf16.msra.mxu0 0
        %1255 = vmatprep.subr.bf16.mxu0 0
        %1256 = vmatpush2.bf16.msra.mxu0 0
        %1257 = vmatprep.subr.bf16.mxu0 0
        %1258 = vmatpush2.bf16.msra.mxu0 0
        %1259 = vmatprep.subr.bf16.mxu0 0
        %1260 = vmatpush2.bf16.msra.mxu0 0
        %1261 = vmatprep.subr.bf16.mxu0 0
        %1262 = vmatpush2.bf16.msra.mxu0 0
        %1263 = vmatprep.subr.bf16.mxu0 0
        %1264 = vmatpush2.bf16.msra.mxu0 0
        %1265 = vmatprep.subr.bf16.mxu0 0
        %1266 = vmatpush2.bf16.msra.mxu0 0
        %1267 = vmatprep.subr.bf16.mxu0 0
        %1268 = vmatpush2.bf16.msra.mxu0 0
        %1269 = vmatprep.mubr.bf16.mxu0 0
        %1270 = vmatmul.mubr.bf16.gmra.mxu0 %v1235
        %v1271 = vpop.f32.mrf.mxu0
        %v1272 = vadd.f32 %v1220, %v1271
        %v1273 = vpop.f32.mrf.mxu0
        %v1274 = vpop.f32.mrf.mxu0
        %v1275 = vpop.f32.mrf.mxu0
        %1276 = vdwg.mxu0
        %v1277 = vadd.f32 %v668, %v1272
        %v1278 = vsel %vm693, %v1277, 0.0
        %1279 = vadd.xlane.f32.xlu0 %v1278
        %v1280 = vpop.xlane.xlu0 %1279
        %v1281 = vrcp.pop 32.0
        %v1282 = vmul.f32 %v1280, %v1281
        %v1283 = vsub.f32 %v1277, %v1282
        %v1284 = vmul.f32 %v1283, %v1283
        %v1285 = vsel %vm693, %v1284, 0.0
        %1286 = vadd.xlane.f32.xlu0 %v1285
        %v1287 = vpop.xlane.xlu0 %1286
        %v1288 = vmul.f32 %v1287, %v1281
        %v1289 = vadd.f32 %v1288, 1e-05
        %v1290 = vrsqrt.pop %v1289
        %v1291 = vmul.f32 %v1283, %v1290
        %v1292 = vld [vmem:[%s634] sm:$0x1]
        %v1294 = vlaneseq
        %v1295 = vshrl.u32 %v1294, 7
        %v1296 = vsub.s32 0, %v1295
        %v1297 = vrot.slane %v1292, %v1296
        %v1299 = vmul.f32 %v1291, %v1297
        %v1300 = vld [vmem:[%s637] sm:$0x1]
        %v1302 = vlaneseq
        %v1303 = vshrl.u32 %v1302, 7
        %v1304 = vsub.s32 0, %v1303
        %v1305 = vrot.slane %v1300, %v1304
        %v1307 = vadd.f32 %v1299, %v1305
        %v1308 = vpack.c.bf16 %v1307, %v1307
        %v1309 = vld [vmem:[%s642] sm:$0xf]
        %v1310 = vld [vmem:[%s642 + $0x4] sm:$0xf]
        %v1311 = vld [vmem:[%s642 + $0x8] sm:$0xf]
        %v1312 = vld [vmem:[%s642 + $0xc] sm:$0xf]
        %v1313 = vld [vmem:[%s645] sm:$0x1]
        %v1315 = vlaneseq
        %v1316 = vshrl.u32 %v1315, 7
        %v1317 = vsub.s32 0, %v1316
        %v1318 = vrot.slane %v1313, %v1317
        %v1324 = vunpack.c.l.b16 %v1309
        %v1325 = vunpack.c.l.b16 %v1310
        %v1326 = vunpack.c.l.b16 %v1311
        %v1327 = vunpack.c.l.b16 %v1312
        %v1328 = vpack.c.b16 %v1325, %v1324
        %v1329 = vpack.c.b16 %v1327, %v1326
        %v1333 = vsel %vm693, %v1308, 0
        %1335 = vmatprep.subr.bf16.mxu0 0
        %1336 = vmatpush1.bf16.msra.mxu0 0
        %1337 = vmatprep.subr.bf16.mxu0 0
        %1338 = vmatpush1.bf16.msra.mxu0 0
        %1339 = vmatprep.subr.bf16.mxu0 0
        %1340 = vmatpush1.bf16.msra.mxu0 0
        %1341 = vmatprep.subr.bf16.mxu0 0
        %1342 = vmatpush1.bf16.msra.mxu0 0
        %1343 = vmatprep.subr.bf16.mxu0 0
        %1344 = vmatpush1.bf16.msra.mxu0 0
        %1345 = vmatprep.subr.bf16.mxu0 0
        %1346 = vmatpush1.bf16.msra.mxu0 0
        %1347 = vmatprep.subr.bf16.mxu0 0
        %1348 = vmatpush1.bf16.msra.mxu0 %v1329
        %1349 = vmatprep.subr.bf16.mxu0 0
        %1350 = vmatpush1.bf16.msra.mxu0 %v1328
        %1351 = vmatprep.subr.bf16.mxu0 0
        %1352 = vmatpush2.bf16.msra.mxu0 0
        %1353 = vmatprep.subr.bf16.mxu0 0
        %1354 = vmatpush2.bf16.msra.mxu0 0
        %1355 = vmatprep.subr.bf16.mxu0 0
        %1356 = vmatpush2.bf16.msra.mxu0 0
        %1357 = vmatprep.subr.bf16.mxu0 0
        %1358 = vmatpush2.bf16.msra.mxu0 0
        %1359 = vmatprep.subr.bf16.mxu0 0
        %1360 = vmatpush2.bf16.msra.mxu0 0
        %1361 = vmatprep.subr.bf16.mxu0 0
        %1362 = vmatpush2.bf16.msra.mxu0 0
        %1363 = vmatprep.subr.bf16.mxu0 0
        %1364 = vmatpush2.bf16.msra.mxu0 0
        %1365 = vmatprep.subr.bf16.mxu0 0
        %1366 = vmatpush2.bf16.msra.mxu0 0
        %1367 = vmatprep.mubr.bf16.mxu0 0
        %1368 = vmatmul.mubr.bf16.gmra.mxu0 %v1333
        %v1369 = vpop.f32.mrf.mxu0
        %v1370 = vadd.f32 %v1318, %v1369
        %v1371 = vpop.f32.mrf.mxu0
        %v1372 = vpop.f32.mrf.mxu0
        %v1373 = vpop.f32.mrf.mxu0
        %1374 = vdwg.mxu0
        %v1375 = vmul.f32 %v1370, %v1370
        %v1376 = vmul.f32 %v1370, %v1375
        %v1377 = vmul.f32 %v1376, 0.044715
        %v1378 = vadd.f32 %v1370, %v1377
        %v1379 = vmul.f32 %v1378, 0.7978846
        %v1380 = vtanh.pop %v1379
        %v1381 = vadd.f32 %v1380, 1.0
        %v1382 = vmul.f32 %v1381, 0.5
        %v1383 = vmul.f32 %v1370, %v1382
        %v1384 = vpack.c.bf16 %v1383, %v1383
        %v1385 = vld [vmem:[%s650] sm:$0xf]
        %v1386 = vld [vmem:[%s650 + $0x4] sm:$0xf]
        %v1387 = vld [vmem:[%s650 + $0x8] sm:$0xf]
        %v1388 = vld [vmem:[%s650 + $0xc] sm:$0xf]
        %v1389 = vld [vmem:[%s650 + $0x10] sm:$0xf]
        %v1390 = vld [vmem:[%s650 + $0x14] sm:$0xf]
        %v1391 = vld [vmem:[%s650 + $0x18] sm:$0xf]
        %v1392 = vld [vmem:[%s650 + $0x1c] sm:$0xf]
        %v1393 = vld [vmem:[%s653] sm:$0x1]
        %v1395 = vlaneseq
        %v1396 = vshrl.u32 %v1395, 7
        %v1397 = vsub.s32 0, %v1396
        %v1398 = vrot.slane %v1393, %v1397
        %v1408 = vunpack.c.l.b16 %v1385
        %v1409 = vunpack.c.l.b16 %v1386
        %v1410 = vunpack.c.l.b16 %v1387
        %v1411 = vunpack.c.l.b16 %v1388
        %v1412 = vunpack.c.l.b16 %v1389
        %v1413 = vunpack.c.l.b16 %v1390
        %v1414 = vunpack.c.l.b16 %v1391
        %v1415 = vunpack.c.l.b16 %v1392
        %v1416 = vpack.c.b16 %v1409, %v1408
        %v1417 = vpack.c.b16 %v1411, %v1410
        %v1418 = vpack.c.b16 %v1413, %v1412
        %v1419 = vpack.c.b16 %v1415, %v1414
        %vm1424 = vcmask 523264
        %v1426 = vsel %vm1424, %v1384, 0
        %1428 = vmatprep.subr.bf16.mxu0 0
        %1429 = vmatpush1.bf16.msra.mxu0 0
        %1430 = vmatprep.subr.bf16.mxu0 0
        %1431 = vmatpush1.bf16.msra.mxu0 0
        %1432 = vmatprep.subr.bf16.mxu0 0
        %1433 = vmatpush1.bf16.msra.mxu0 0
        %1434 = vmatprep.subr.bf16.mxu0 0
        %1435 = vmatpush1.bf16.msra.mxu0 0
        %1436 = vmatprep.subr.bf16.mxu0 0
        %1437 = vmatpush1.bf16.msra.mxu0 %v1419
        %1438 = vmatprep.subr.bf16.mxu0 0
        %1439 = vmatpush1.bf16.msra.mxu0 %v1418
        %1440 = vmatprep.subr.bf16.mxu0 0
        %1441 = vmatpush1.bf16.msra.mxu0 %v1417
        %1442 = vmatprep.subr.bf16.mxu0 0
        %1443 = vmatpush1.bf16.msra.mxu0 %v1416
        %1444 = vmatprep.subr.bf16.mxu0 0
        %1445 = vmatpush2.bf16.msra.mxu0 0
        %1446 = vmatprep.subr.bf16.mxu0 0
        %1447 = vmatpush2.bf16.msra.mxu0 0
        %1448 = vmatprep.subr.bf16.mxu0 0
        %1449 = vmatpush2.bf16.msra.mxu0 0
        %1450 = vmatprep.subr.bf16.mxu0 0
        %1451 = vmatpush2.bf16.msra.mxu0 0
        %1452 = vmatprep.subr.bf16.mxu0 0
        %1453 = vmatpush2.bf16.msra.mxu0 0
        %1454 = vmatprep.subr.bf16.mxu0 0
        %1455 = vmatpush2.bf16.msra.mxu0 0
        %1456 = vmatprep.subr.bf16.mxu0 0
        %1457 = vmatpush2.bf16.msra.mxu0 0
        %1458 = vmatprep.subr.bf16.mxu0 0
        %1459 = vmatpush2.bf16.msra.mxu0 0
        %1460 = vmatprep.mubr.bf16.mxu0 0
        %1461 = vmatmul.mubr.bf16.gmra.mxu0 %v1426
        %v1462 = vpop.f32.mrf.mxu0
        %v1463 = vadd.f32 %v1398, %v1462
        %v1464 = vpop.f32.mrf.mxu0
        %v1465 = vpop.f32.mrf.mxu0
        %v1466 = vpop.f32.mrf.mxu0
        %1467 = vdwg.mxu0
        %v1468 = vadd.f32 %v1307, %v1463
        %v1469 = vsel %vm693, %v1468, 0.0
        %1470 = vadd.xlane.f32.xlu0 %v1469
        %v1471 = vpop.xlane.xlu0 %1470
        %v1472 = vmul.f32 %v1471, %v1281
        %v1473 = vsub.f32 %v1468, %v1472
        %v1474 = vmul.f32 %v1473, %v1473
        %v1475 = vsel %vm693, %v1474, 0.0
        %1476 = vadd.xlane.f32.xlu0 %v1475
        %v1477 = vpop.xlane.xlu0 %1476
        %v1478 = vmul.f32 %v1477, %v1281
        %v1479 = vadd.f32 %v1478, 1e-05
        %v1480 = vrsqrt.pop %v1479
        %v1481 = vmul.f32 %v1473, %v1480
        %v1482 = vld [vmem:[%s656] sm:$0x1]
        %v1484 = vlaneseq
        %v1485 = vshrl.u32 %v1484, 7
        %v1486 = vsub.s32 0, %v1485
        %v1487 = vrot.slane %v1482, %v1486
        %v1489 = vmul.f32 %v1481, %v1487
        %v1490 = vld [vmem:[%s659] sm:$0x1]
        %v1492 = vlaneseq
        %v1493 = vshrl.u32 %v1492, 7
        %v1494 = vsub.s32 0, %v1493
        %v1495 = vrot.slane %v1490, %v1494
        %v1497 = vadd.f32 %v1489, %v1495
        %1498 = vst.msk [vmem:[#allocation2] sm:$0xff] %vm693, %v1497
        %1499 = vst.msk [vmem:[%s615] sm:$0xff] %vm693, %v1497
        %s1500 = sand.u32 %s388, 1
        %s1501 = scalar_lea.sflag [#allocation6], %s1500
        %s1502 = sand.u32 %s388, 1
        %s1503 = smul.addr %s1502, 8
        %s1504 = scalar_lea.vmem [#allocation7], %s1503
        // Predicated region
        $region81: #{tpu_custom_call.1} parent=71 // pred_check
          %p1505 = pneg %p398
        $region82: #{tpu_custom_call.1} parent=71 // pred_check_branch
          %1507 = sbr.rel (%p1505) target = $region84
        $region83: #{tpu_custom_call.1} parent=71 // pred_region
          %s1509 = ssub.s32 128, 128
          %1510 = vsyncadd %s1501, %s1509
          %s1511 = smul.addr %s34, 128
          %s1512 = scalar_lea.hbm %s13, %s1511
          %s1514 = sshll.u32 %s1504, 4
          %s1515 = int_to_ptr.vmem [resolvable:$true] %s1514
          %1517 = dma.vmem_to_hbm [thread:$0]  %s1515, 128, %s1512, %s1501
        $region84: #{tpu_custom_call.1} parent=71 // pred_fallthru
          _
      $region72: #{tpu_custom_call.1} parent=5 // pred_fallthru
        _
      %p1518 = scmp.le.s32.totalorder 2, %s25
      // Predicated region
      $region85: #{tpu_custom_call.1} parent=5 // pred_check
        %p1519 = pneg %p1518
      $region86: #{tpu_custom_call.1} parent=5 // pred_check_branch
        %1521 = sbr.rel (%p1519) target = $region88
      $region87: #{tpu_custom_call.1} parent=5 // pred_region
        %s1522 = ssub.s32 %s25, 2
        // Predicated region
        $region89: #{tpu_custom_call.1} parent=87 // pred_check
          %p1523 = pneg %p404
        $region90: #{tpu_custom_call.1} parent=87 // pred_check_branch
          %1525 = sbr.rel (%p1523) target = $region92
        $region91: #{tpu_custom_call.1} parent=87 // pred_region
          %s1526 = sand.u32 %s389, 1
          %s1527 = scalar_lea.sflag [#allocation6], %s1526
          %s1528 = sand.u32 %s389, 1
          %s1529 = smul.addr %s1528, 8
          %s1530 = scalar_lea.vmem [#allocation7], %s1529
          %1531 = dma.done %s1527, 128
        $region92: #{tpu_custom_call.1} parent=87 // pred_fallthru
          _
      $region88: #{tpu_custom_call.1} parent=5 // pred_fallthru
        _
    $region6: #{tpu_custom_call.1} parent=1 // loop_footer
      %s29 = sadd.s32 1, %s25
    $region7: #{tpu_custom_call.1} parent=1 // loop_footer_branch
      %24 = sbr.rel target = $region3
    $region8: #{tpu_custom_call.1} parent=1 // loop_exit
      _
    %1532 = vsyncpa [#allocation5], 1
    %s1533 = scalar_lea.sflag [#allocation5], 1
    %1534 = vsyncpa %s1533, 1
    %1535 = vsyncpa [#allocation6], 1
    %s1536 = scalar_lea.sflag [#allocation6], 1
    %1537 = vsyncpa %s1536, 1

</llo_original>
